<compile_context>
chip_gen: v7x
topology: tpu7x:2x2x1
jax: 0.10.0
libtpu: 0.0.40
codegen_flags: <defaults>
</compile_context>

<pallas_src>
import functools

import jax
import jax.numpy as jnp
from jax.experimental import pallas as pl
from jax.experimental.pallas import tpu as pltpu


def _round_up(x, m):
    return ((x + m - 1) // m) * m


def _silu(x):
    return x * jax.nn.sigmoid(x)


def _elementwise_dtype():
    """bf16 VPU/EUP paths exist on v6e/v7x; keep f32 elementwise on <= v5."""
    try:
        kind = jax.devices()[0].device_kind.lower()
    except Exception:
        return jnp.float32
    for old in ("v2", "v3", "v4", "v5"):
        if old in kind:
            return jnp.float32
    return jnp.bfloat16


# ---------------------------------------------------------------------------
# Fused Pallas kernel: streamed backbone + GAP accumulation + myfc head
# ---------------------------------------------------------------------------

def _fused_kernel(p_ref, w1_ref, b1_ref, w2_ref, b2_ref, wfc_ref, bfc_ref,
                  out_ref, gap_ref, *, p_real, need_mask, compute_dtype):
    """Grid = (batch_tiles [parallel], spatial_tiles [arbitrary/reduction]).

       p_ref:   (TB, TP, K_pad)        bf16 im2col patch block
       w1_ref:  (K_pad, CMID_pad)      bf16 stem conv weights   (resident)
       b1_ref:  (1, CMID_pad)          f32
       w2_ref:  (CMID_pad, CFEAT_pad)  bf16 pointwise weights   (resident)
       b2_ref:  (1, CFEAT_pad)         f32
       wfc_ref: (CFEAT_pad, OUT_pad)   bf16 myfc weights        (resident)
       bfc_ref: (1, OUT_pad)           f32
       out_ref: (TB, OUT_pad)          f32 logits (lane-dense, revisited
                                       across the spatial axis)
       gap_ref: (TB, CFEAT_pad)        f32 VMEM GAP accumulator (scratch)
    """
    s = pl.program_id(1)
    n_s = pl.num_programs(1)

    @pl.when(s == 0)
    def _zero():
        gap_ref[...] = jnp.zeros_like(gap_ref)

    tb, tp, kp = p_ref.shape
    x = p_ref[...].reshape(tb * tp, kp)                          # bf16 rows

    # Conv stem as one MXU matmul over the tile's rows (f32 accumulate).
    h1 = jnp.dot(x, w1_ref[...],
                 preferred_element_type=jnp.float32) + b1_ref[...]
    h1 = _silu(h1.astype(compute_dtype))

    # Pointwise conv.
    h2 = jnp.dot(h1.astype(jnp.bfloat16), w2_ref[...],
                 preferred_element_type=jnp.float32) + b2_ref[...]
    h2 = _silu(h2.astype(compute_dtype))

    # Zero out spatial-padding rows so they do not pollute the GAP.
    # (Static no-op when the spatial tiling divides the real P.)
    if need_mask:
        row = jax.lax.broadcasted_iota(jnp.int32, h2.shape, 0)
        p_glob = s * tp + (row % tp)
        h2 = jnp.where(p_glob < p_real, h2, jnp.zeros_like(h2))

    # Partial GAP: per-image sum over this tile's spatial rows (f32 accum).
    gap_ref[...] += jnp.sum(
        h2.reshape(tb, tp, h2.shape[-1]).astype(jnp.float32), axis=1)

    # Final spatial step: finish GAP, fused myfc head, lane-dense f32 store.
    # Dropout(0.5) is identity in eval mode.
    # TODO(synk): training-mode dropout would use pltpu.prng_seed +
    # pltpu.prng_random_bits with 1/(1-p) scaling.
    @pl.when(s == n_s - 1)
    def _final():
        gap = gap_ref[...] * (1.0 / p_real)
        out_ref[...] = (jnp.dot(gap.astype(jnp.bfloat16), wfc_ref[...],
                                preferred_element_type=jnp.float32)
                        + bfc_ref[...])


# ---------------------------------------------------------------------------
# Plain-JAX glue (layout plumbing only)
# ---------------------------------------------------------------------------

def im2col_3x3_s2(x_nhwc):
    """3x3 / stride-2 / pad-1 patch extraction."""
    # TODO(synk): avoid materializing the ~2.25x-expanded patch tensor in HBM
    # by DMA-ing tap-shifted row slabs inside the kernel (memory_space=pl.ANY);
    # kept in the wrapper here for simplicity.
    x = jnp.pad(x_nhwc, ((0, 0), (1, 1), (1, 1), (0, 0)))
    B, H, W, C = x.shape
    Ho = (H - 3) // 2 + 1
    Wo = (W - 3) // 2 + 1
    taps = []
    for ki in range(3):
        for kj in range(3):
            taps.append(x[:, ki:ki + 2 * Ho:2, kj:kj + 2 * Wo:2, :])
    p = jnp.stack(taps, axis=3)                                  # (B,Ho,Wo,9,C)
    return p.reshape(B, Ho * Wo, 9 * C)


class EffnetMetaPallas:
    """Pallas re-implementation of EffnetMeta.forward (eval mode).
    extract() + squeeze + dropout + myfc are fused into one kernel call."""

    LANE = 128
    SUBLANE = 8
    TB = 8        # images per batch tile ((8,128)-aligned output block)
    TP_MAX = 512  # spatial rows per grid step (bounds per-step VMEM)

    def __init__(self, out_dim, in_ch=3, c_mid=16, c_feat=32,
                 key=jax.random.PRNGKey(42)):
        k1, k2, k3, k4, k5, k6 = jax.random.split(key, 6)
        K = 9 * in_ch
        # Deterministic synthetic parameters (kaiming-ish scaling), f32 masters.
        w1 = jax.random.normal(k1, (K, c_mid), jnp.float32) / jnp.sqrt(K)
        b1 = 0.01 * jax.random.normal(k2, (c_mid,), jnp.float32)
        w2 = jax.random.normal(k3, (c_mid, c_feat), jnp.float32) / jnp.sqrt(c_mid)
        b2 = 0.01 * jax.random.normal(k4, (c_feat,), jnp.float32)
        wfc = jax.random.normal(k5, (c_feat, out_dim), jnp.float32) / jnp.sqrt(c_feat)
        bfc = 0.01 * jax.random.normal(k6, (out_dim,), jnp.float32)

        self.K = K
        self.out_dim = out_dim
        # Pad channel dims to hardware tiles once, at construction time.
        # (K deliberately NOT padded to 128: it would 4x the LHS DMA traffic.)
        self.K_pad = _round_up(K, self.SUBLANE)            # 27 -> 32
        self.CMID_pad = _round_up(c_mid, self.LANE)        # 16 -> 128
        self.CFEAT_pad = _round_up(c_feat, self.LANE)      # 32 -> 128
        self.OUT_pad = _round_up(out_dim, self.LANE)       # out_dim -> 128

        def pad2(a, r, c):
            return jnp.pad(a, ((0, r - a.shape[0]), (0, c - a.shape[1])))

        # MXU operands in bf16; biases stay f32.
        self.w1_p = pad2(w1, self.K_pad, self.CMID_pad).astype(jnp.bfloat16)
        self.b1_p = pad2(b1[None, :], 1, self.CMID_pad)
        self.w2_p = pad2(w2, self.CMID_pad, self.CFEAT_pad).astype(jnp.bfloat16)
        self.b2_p = pad2(b2[None, :], 1, self.CFEAT_pad)
        self.wfc_p = pad2(wfc, self.CFEAT_pad, self.OUT_pad).astype(jnp.bfloat16)
        self.bfc_p = pad2(bfc[None, :], 1, self.OUT_pad)

        self.compute_dtype = _elementwise_dtype()

    def __call__(self, x_nchw, x_meta=None):
        x = jnp.transpose(x_nchw, (0, 2, 3, 1))             # NCHW -> NHWC
        patches = im2col_3x3_s2(x)                          # (B, P, 9*C_in)
        B, P, K = patches.shape

        TB = self.TB
        B_pad = _round_up(B, TB)
        # Spatial tile: multiple of 16 (bf16 sublane packing), capped for VMEM.
        tp = min(_round_up(P, 16), self.TP_MAX)
        P_pad = _round_up(P, tp)
        need_mask = (P_pad != P)

        patches = jnp.pad(
            patches,
            ((0, B_pad - B), (0, P_pad - P), (0, self.K_pad - K)),
        ).astype(jnp.bfloat16)                              # (B_pad, P_pad, K_pad)

        grid = (B_pad // TB, P_pad // tp)

        kernel = functools.partial(
            _fused_kernel, p_real=P, need_mask=need_mask,
            compute_dtype=self.compute_dtype)

        rows_total = B_pad * P_pad
        cost = pl.CostEstimate(
            flops=(2 * rows_total * (self.K_pad * self.CMID_pad
                                     + self.CMID_pad * self.CFEAT_pad)
                   + 2 * B_pad * self.CFEAT_pad * self.OUT_pad),
            transcendentals=rows_total * (self.CMID_pad + self.CFEAT_pad),
            bytes_accessed=(rows_total * self.K_pad * 2
                            + 2 * (self.K_pad * self.CMID_pad
                                   + self.CMID_pad * self.CFEAT_pad
                                   + self.CFEAT_pad * self.OUT_pad)
                            + B_pad * self.OUT_pad * 4),
        )

        out_p = pl.pallas_call(
            kernel,
            out_shape=jax.ShapeDtypeStruct((B_pad, self.OUT_pad), jnp.float32),
            grid=grid,
            in_specs=[
                # Streamed LHS block: (batch tile, spatial tile).
                pl.BlockSpec((TB, tp, self.K_pad), lambda b, s: (b, s, 0)),
                # Weights / biases: constant index maps -> VMEM-resident.
                pl.BlockSpec((self.K_pad, self.CMID_pad), lambda b, s: (0, 0)),
                pl.BlockSpec((1, self.CMID_pad), lambda b, s: (0, 0)),
                pl.BlockSpec((self.CMID_pad, self.CFEAT_pad), lambda b, s: (0, 0)),
                pl.BlockSpec((1, self.CFEAT_pad), lambda b, s: (0, 0)),
                pl.BlockSpec((self.CFEAT_pad, self.OUT_pad), lambda b, s: (0, 0)),
                pl.BlockSpec((1, self.OUT_pad), lambda b, s: (0, 0)),
            ],
            # Output block is revisited across the spatial (reduction) axis.
            out_specs=pl.BlockSpec((TB, self.OUT_pad), lambda b, s: (b, 0)),
            scratch_shapes=[pltpu.VMEM((TB, self.CFEAT_pad), jnp.float32)],
            compiler_params=pltpu.CompilerParams(
                dimension_semantics=("parallel", "arbitrary"),
                vmem_limit_bytes=32 * 1024 * 1024),
            cost_estimate=cost,
        )(patches, self.w1_p, self.b1_p, self.w2_p, self.b2_p,
          self.wfc_p, self.bfc_p)

        # Slice padded batch rows / output lanes back to the logical shape.
        return out_p[:B, :self.out_dim]


if __name__ == "__main__":
    key = jax.random.PRNGKey(0)
    # PyTorch-style NCHW input (batch=2, RGB channels=3, 16x16 spatial).
    x = jax.random.normal(key, (2, 3, 16, 16), jnp.float32)

    model = EffnetMetaPallas(out_dim=8, in_ch=3)
    out = model(x)                      # x_meta unused, matching the reference forward
    out = jax.block_until_ready(out)

    assert out.shape == (2, 8), out.shape
    assert out.dtype == jnp.float32
    print("KERNEL_OK")
</pallas_src>

<mosaic_0001>
module attributes {stable_mosaic.version = 11 : i64} {
  func.func @_fused_kernel(%arg0: i32, %arg1: i32, %arg2: memref<8x64x32xbf16, #tpu.memory_space<vmem>>, %arg3: memref<32x128xbf16, #tpu.memory_space<vmem>>, %arg4: memref<1x128xf32, #tpu.memory_space<vmem>>, %arg5: memref<128x128xbf16, #tpu.memory_space<vmem>>, %arg6: memref<1x128xf32, #tpu.memory_space<vmem>>, %arg7: memref<128x128xbf16, #tpu.memory_space<vmem>>, %arg8: memref<1x128xf32, #tpu.memory_space<vmem>>, %arg9: memref<8x128xf32, #tpu.memory_space<vmem>>, %arg10: memref<8x128xf32, #tpu.memory_space<vmem>>) attributes {dimension_semantics = [#tpu.dimension_semantics<parallel>, #tpu.dimension_semantics<arbitrary>], iteration_bounds = array<i64: 1, 1>, scalar_prefetch = 0 : i64, scratch_operands = 1 : i64, tpu.core_type = #tpu.core_type<tc>, window_params = [{transform_indices = @transform_0, window_bounds = array<i64: 8, 64, 32>}, {pipeline_mode = #tpu.pipeline_mode<synchronous>, transform_indices = @transform_1, window_bounds = array<i64: 32, 128>}, {pipeline_mode = #tpu.pipeline_mode<synchronous>, transform_indices = @transform_2, window_bounds = array<i64: 1, 128>}, {pipeline_mode = #tpu.pipeline_mode<synchronous>, transform_indices = @transform_3, window_bounds = array<i64: 128, 128>}, {pipeline_mode = #tpu.pipeline_mode<synchronous>, transform_indices = @transform_4, window_bounds = array<i64: 1, 128>}, {pipeline_mode = #tpu.pipeline_mode<synchronous>, transform_indices = @transform_5, window_bounds = array<i64: 128, 128>}, {pipeline_mode = #tpu.pipeline_mode<synchronous>, transform_indices = @transform_6, window_bounds = array<i64: 1, 128>}, {transform_indices = @transform_7, window_bounds = array<i64: 8, 128>}]} {
    %c0_i32 = arith.constant 0 : i32
    %0 = arith.cmpi eq, %arg1, %c0_i32 : i32
    %1 = arith.extui %0 : i1 to i32
    %c0_i32_0 = arith.constant 0 : i32
    %2 = arith.cmpi ne, %1, %c0_i32_0 : i32
    scf.if %2 {
      %cst_21 = arith.constant 0.000000e+00 : f32
      %38 = vector.broadcast %cst_21 : f32 to vector<8x128xf32>
      %c0_22 = arith.constant 0 : index
      %c0_23 = arith.constant 0 : index
      %39 = vector.load %arg10[%c0_22, %c0_23] : memref<8x128xf32, #tpu.memory_space<vmem>>, vector<8x128xf32>
      tpu.vector_store %arg10[%c0_22, %c0_23], %38 {strides = array<i32>} : memref<8x128xf32, #tpu.memory_space<vmem>>, vector<8x128xf32>,
    } else {
    }
    %c0 = arith.constant 0 : index
    %c0_1 = arith.constant 0 : index
    %c0_2 = arith.constant 0 : index
    %3 = vector.load %arg2[%c0, %c0_1, %c0_2] : memref<8x64x32xbf16, #tpu.memory_space<vmem>>, vector<8x64x32xbf16>
    %4 = vector.shape_cast %3 : vector<8x64x32xbf16> to vector<512x32xbf16>
    %c0_3 = arith.constant 0 : index
    %c0_4 = arith.constant 0 : index
    %5 = vector.load %arg3[%c0_3, %c0_4] : memref<32x128xbf16, #tpu.memory_space<vmem>>, vector<32x128xbf16>
    %cst = arith.constant dense<0.000000e+00> : vector<512x128xf32>
    %6 = tpu.matmul %4, %5, %cst {dimension_numbers = #tpu.dot_dimension_numbers<[1], [0], [0], [1], [0, 0, 1, 1], [], []>} : vector<512x32xbf16>, vector<32x128xbf16>, vector<512x128xf32> -> vector<512x128xf32>
    %c0_5 = arith.constant 0 : index
    %c0_6 = arith.constant 0 : index
    %7 = vector.load %arg4[%c0_5, %c0_6] : memref<1x128xf32, #tpu.memory_space<vmem>>, vector<1x128xf32>
    %8 = vector.broadcast %7 : vector<1x128xf32> to vector<512x128xf32>
    %9 = arith.addf %6, %8 : vector<512x128xf32>
    %10 = arith.truncf %9 : vector<512x128xf32> to vector<512x128xbf16>
    %11 = arith.negf %10 : vector<512x128xbf16>
    %12 = math.exp %11 : vector<512x128xbf16>
    %cst_7 = arith.constant 1.000000e+00 : bf16
    %13 = vector.broadcast %cst_7 : bf16 to vector<512x128xbf16>
    %14 = arith.addf %13, %12 : vector<512x128xbf16>
    %15 = arith.divf %13, %14 : vector<512x128xbf16>
    %16 = arith.mulf %10, %15 : vector<512x128xbf16>
    %c0_8 = arith.constant 0 : index
    %c0_9 = arith.constant 0 : index
    %17 = vector.load %arg5[%c0_8, %c0_9] : memref<128x128xbf16, #tpu.memory_space<vmem>>, vector<128x128xbf16>
    %cst_10 = arith.constant dense<0.000000e+00> : vector<512x128xf32>
    %18 = tpu.matmul %16, %17, %cst_10 {dimension_numbers = #tpu.dot_dimension_numbers<[1], [0], [0], [1], [0, 0, 1, 1], [], []>} : vector<512x128xbf16>, vector<128x128xbf16>, vector<512x128xf32> -> vector<512x128xf32>
    %c0_11 = arith.constant 0 : index
    %c0_12 = arith.constant 0 : index
    %19 = vector.load %arg6[%c0_11, %c0_12] : memref<1x128xf32, #tpu.memory_space<vmem>>, vector<1x128xf32>
    %20 = vector.broadcast %19 : vector<1x128xf32> to vector<512x128xf32>
    %21 = arith.addf %18, %20 : vector<512x128xf32>
    %22 = arith.truncf %21 : vector<512x128xf32> to vector<512x128xbf16>
    %23 = arith.negf %22 : vector<512x128xbf16>
    %24 = math.exp %23 : vector<512x128xbf16>
    %cst_13 = arith.constant 1.000000e+00 : bf16
    %25 = vector.broadcast %cst_13 : bf16 to vector<512x128xbf16>
    %26 = arith.addf %25, %24 : vector<512x128xbf16>
    %27 = arith.divf %25, %26 : vector<512x128xbf16>
    %28 = arith.mulf %22, %27 : vector<512x128xbf16>
    %c0_14 = arith.constant 0 : index
    %c0_15 = arith.constant 0 : index
    %29 = vector.load %arg10[%c0_14, %c0_15] : memref<8x128xf32, #tpu.memory_space<vmem>>, vector<8x128xf32>
    %30 = vector.shape_cast %28 : vector<512x128xbf16> to vector<8x64x128xbf16>
    %31 = arith.extf %30 : vector<8x64x128xbf16> to vector<8x64x128xf32>
    %cst_16 = arith.constant dense<0.000000e+00> : vector<8x128xf32>
    %32 = vector.multi_reduction <add>, %31, %cst_16 [1] : vector<8x64x128xf32> to vector<8x128xf32>
    %33 = arith.addf %29, %32 : vector<8x128xf32>
    %c0_17 = arith.constant 0 : index
    %c0_18 = arith.constant 0 : index
    %34 = vector.load %arg10[%c0_17, %c0_18] : memref<8x128xf32, #tpu.memory_space<vmem>>, vector<8x128xf32>
    tpu.vector_store %arg10[%c0_17, %c0_18], %33 {strides = array<i32>} : memref<8x128xf32, #tpu.memory_space<vmem>>, vector<8x128xf32>,
    %c0_i32_19 = arith.constant 0 : i32
    %35 = arith.cmpi eq, %arg1, %c0_i32_19 : i32
    %36 = arith.extui %35 : i1 to i32
    %c0_i32_20 = arith.constant 0 : i32
    %37 = arith.cmpi ne, %36, %c0_i32_20 : i32
    scf.if %37 {
      %c0_21 = arith.constant 0 : index
      %c0_22 = arith.constant 0 : index
      %38 = vector.load %arg10[%c0_21, %c0_22] : memref<8x128xf32, #tpu.memory_space<vmem>>, vector<8x128xf32>
      %cst_23 = arith.constant 1.562500e-02 : f32
      %39 = vector.broadcast %cst_23 : f32 to vector<8x128xf32>
      %40 = arith.mulf %38, %39 : vector<8x128xf32>
      %41 = arith.truncf %40 : vector<8x128xf32> to vector<8x128xbf16>
      %c0_24 = arith.constant 0 : index
      %c0_25 = arith.constant 0 : index
      %42 = vector.load %arg7[%c0_24, %c0_25] : memref<128x128xbf16, #tpu.memory_space<vmem>>, vector<128x128xbf16>
      %cst_26 = arith.constant dense<0.000000e+00> : vector<8x128xf32>
      %43 = tpu.matmul %41, %42, %cst_26 {dimension_numbers = #tpu.dot_dimension_numbers<[1], [0], [0], [1], [0, 0, 1, 1], [], []>} : vector<8x128xbf16>, vector<128x128xbf16>, vector<8x128xf32> -> vector<8x128xf32>
      %c0_27 = arith.constant 0 : index
      %c0_28 = arith.constant 0 : index
      %44 = vector.load %arg8[%c0_27, %c0_28] : memref<1x128xf32, #tpu.memory_space<vmem>>, vector<1x128xf32>
      %45 = vector.broadcast %44 : vector<1x128xf32> to vector<8x128xf32>
      %46 = arith.addf %43, %45 : vector<8x128xf32>
      %c0_29 = arith.constant 0 : index
      %c0_30 = arith.constant 0 : index
      %47 = vector.load %arg9[%c0_29, %c0_30] : memref<8x128xf32, #tpu.memory_space<vmem>>, vector<8x128xf32>
      tpu.vector_store %arg9[%c0_29, %c0_30], %46 {strides = array<i32>} : memref<8x128xf32, #tpu.memory_space<vmem>>, vector<8x128xf32>,
    } else {
    }
    return
  }
  func.func @transform_0(%arg0: i32, %arg1: i32) -> (i32, i32, i32) {
    %c0_i32 = arith.constant 0 : i32
    %c0_i32_0 = arith.constant 0 : i32
    return %arg0, %arg1, %c0_i32 : i32, i32, i32
  }
  func.func @transform_1(%arg0: i32, %arg1: i32) -> (i32, i32) {
    %c0_i32 = arith.constant 0 : i32
    %c0_i32_0 = arith.constant 0 : i32
    %c0_i32_1 = arith.constant 0 : i32
    return %c0_i32, %c0_i32_0 : i32, i32
  }
  func.func @transform_2(%arg0: i32, %arg1: i32) -> (i32, i32) {
    %c0_i32 = arith.constant 0 : i32
    %c0_i32_0 = arith.constant 0 : i32
    %c0_i32_1 = arith.constant 0 : i32
    return %c0_i32, %c0_i32_0 : i32, i32
  }
  func.func @transform_3(%arg0: i32, %arg1: i32) -> (i32, i32) {
    %c0_i32 = arith.constant 0 : i32
    %c0_i32_0 = arith.constant 0 : i32
    %c0_i32_1 = arith.constant 0 : i32
    return %c0_i32, %c0_i32_0 : i32, i32
  }
  func.func @transform_4(%arg0: i32, %arg1: i32) -> (i32, i32) {
    %c0_i32 = arith.constant 0 : i32
    %c0_i32_0 = arith.constant 0 : i32
    %c0_i32_1 = arith.constant 0 : i32
    return %c0_i32, %c0_i32_0 : i32, i32
  }
  func.func @transform_5(%arg0: i32, %arg1: i32) -> (i32, i32) {
    %c0_i32 = arith.constant 0 : i32
    %c0_i32_0 = arith.constant 0 : i32
    %c0_i32_1 = arith.constant 0 : i32
    return %c0_i32, %c0_i32_0 : i32, i32
  }
  func.func @transform_6(%arg0: i32, %arg1: i32) -> (i32, i32) {
    %c0_i32 = arith.constant 0 : i32
    %c0_i32_0 = arith.constant 0 : i32
    %c0_i32_1 = arith.constant 0 : i32
    return %c0_i32, %c0_i32_0 : i32, i32
  }
  func.func @transform_7(%arg0: i32, %arg1: i32) -> (i32, i32) {
    %c0_i32 = arith.constant 0 : i32
    %c0_i32_0 = arith.constant 0 : i32
    return %arg0, %c0_i32 : i32, i32
  }
}

</mosaic_0001>

<llo_original>
// kernel: tpu_custom_call.1
$region0: #{tpu_custom_call.1}
  #allocation0 [shape = 'u32[]', space=smem, size = 0x4, offset = 0x4, fixed_abs, tag = 'smem constant byte address 0x4 - core index']
  #allocation1 [shape = 'u32[144,128]{1,0:T(1,128)}', space=vmem, size = 0x12000, scoped, tag = 'internal scratch']
  #allocation2 [shape = 'f32[8,128]{1,0:T(8,128)}', space=vmem, size = 0x1000, scoped, tag = 'scratch operand']
  %s0 = inlined_call_operand.vmem [shape: bf16[8,64,32], index: 0, kind: input, shape index: {}]
  %s1 = inlined_call_operand.vmem [shape: bf16[32,128], index: 1, kind: input, shape index: {}]
  %s2 = inlined_call_operand.vmem [shape: f32[1,128], index: 2, kind: input, shape index: {}]
  %s3 = inlined_call_operand.vmem [shape: bf16[128,128], index: 3, kind: input, shape index: {}]
  %s4 = inlined_call_operand.vmem [shape: f32[1,128], index: 4, kind: input, shape index: {}]
  %s5 = inlined_call_operand.vmem [shape: bf16[128,128], index: 5, kind: input, shape index: {}]
  %s6 = inlined_call_operand.vmem [shape: f32[1,128], index: 6, kind: input, shape index: {}]
  %s7 = inlined_call_operand.hbm [shape: f32[8,128], index: 7, kind: output, shape index: {}]
  %s8 = sld [smem:[#allocation0]]
  $region46: #{tpu_custom_call.1} parent=0
    _
  %s10 = ssub.s32 1, %s8
  %s11 = scalar_select 0, %s10, %s8
  $region1: #{tpu_custom_call.1} parent=0
    #allocation3 [shape = 'u8[4096]{0}', space=vmem, size = 0x1000, scoped, tag = 'output window, operand 0, single buffered']
    #allocation4 [shape = 's32[1]{0}', space=sflag, size = 0x4, scoped, tag = 'scoped memory for tpu_custom_call.1']
    %12 = vsyncpa [#allocation4], 0
    // Predicated region
    $region2: #{tpu_custom_call.1} parent=1 // pred_check
      _
    $region3: #{tpu_custom_call.1} parent=1 // pred_check_branch
      %14 = sbr.rel (0) target = $region5
    $region4: #{tpu_custom_call.1} parent=1 // pred_region
      _
    $region5: #{tpu_custom_call.1} parent=1 // pred_fallthru
      _
    // Predicated region
    $region6: #{tpu_custom_call.1} parent=1 // pred_check
      _
    $region7: #{tpu_custom_call.1} parent=1 // pred_check_branch
      %16 = sbr.rel (0) target = $region9
    $region8: #{tpu_custom_call.1} parent=1 // pred_region
      _
    $region9: #{tpu_custom_call.1} parent=1 // pred_fallthru
      _
    // Predicated region
    $region10: #{tpu_custom_call.1} parent=1 // pred_check
      _
    $region11: #{tpu_custom_call.1} parent=1 // pred_check_branch
      %18 = sbr.rel (0) target = $region13
    $region12: #{tpu_custom_call.1} parent=1 // pred_region
      _
    $region13: #{tpu_custom_call.1} parent=1 // pred_fallthru
      _
    // Predicated region
    $region14: #{tpu_custom_call.1} parent=1 // pred_check
      _
    $region15: #{tpu_custom_call.1} parent=1 // pred_check_branch
      %20 = sbr.rel (0) target = $region17
    $region16: #{tpu_custom_call.1} parent=1 // pred_region
      _
    $region17: #{tpu_custom_call.1} parent=1 // pred_fallthru
      _
    // Predicated region
    $region18: #{tpu_custom_call.1} parent=1 // pred_check
      _
    $region19: #{tpu_custom_call.1} parent=1 // pred_check_branch
      %22 = sbr.rel (0) target = $region21
    $region20: #{tpu_custom_call.1} parent=1 // pred_region
      _
    $region21: #{tpu_custom_call.1} parent=1 // pred_fallthru
      _
    // Predicated region
    $region22: #{tpu_custom_call.1} parent=1 // pred_check
      _
    $region23: #{tpu_custom_call.1} parent=1 // pred_check_branch
      %24 = sbr.rel (0) target = $region25
    $region24: #{tpu_custom_call.1} parent=1 // pred_region
      _
    $region25: #{tpu_custom_call.1} parent=1 // pred_fallthru
      _
    // Predicated region
    $region26: #{tpu_custom_call.1} parent=1 // pred_check
      _
    $region27: #{tpu_custom_call.1} parent=1 // pred_check_branch
      %26 = sbr.rel (0) target = $region29
    $region28: #{tpu_custom_call.1} parent=1 // pred_region
      _
    $region29: #{tpu_custom_call.1} parent=1 // pred_fallthru
      _
    %p29 = scmp.eq.s32.totalorder 0, 0
    // Predicated region
    $region30: #{tpu_custom_call.1} parent=1 // pred_check
      %p30 = pneg %p29
    $region31: #{tpu_custom_call.1} parent=1 // pred_check_branch
      %32 = sbr.rel (%p30) target = $region33
    $region32: #{tpu_custom_call.1} parent=1 // pred_region
      %33 = vst [vmem:[#allocation2] sm:$0xff] 0.0
    $region33: #{tpu_custom_call.1} parent=1 // pred_fallthru
      _
    %v34 = vld [vmem:[%s0] sm:$0xf]
    %v35 = vld [vmem:[%s0 + $0x4] sm:$0xf]
    %v36 = vld [vmem:[%s0 + $0x8] sm:$0xf]
    %v37 = vld [vmem:[%s0 + $0xc] sm:$0xf]
    %v38 = vld [vmem:[%s0 + $0x10] sm:$0xf]
    %v39 = vld [vmem:[%s0 + $0x14] sm:$0xf]
    %v40 = vld [vmem:[%s0 + $0x18] sm:$0xf]
    %v41 = vld [vmem:[%s0 + $0x1c] sm:$0xf]
    %v42 = vld [vmem:[%s0 + $0x20] sm:$0xf]
    %v43 = vld [vmem:[%s0 + $0x24] sm:$0xf]
    %v44 = vld [vmem:[%s0 + $0x28] sm:$0xf]
    %v45 = vld [vmem:[%s0 + $0x2c] sm:$0xf]
    %v46 = vld [vmem:[%s0 + $0x30] sm:$0xf]
    %v47 = vld [vmem:[%s0 + $0x34] sm:$0xf]
    %v48 = vld [vmem:[%s0 + $0x38] sm:$0xf]
    %v49 = vld [vmem:[%s0 + $0x3c] sm:$0xf]
    %v50 = vld [vmem:[%s0 + $0x40] sm:$0xf]
    %v51 = vld [vmem:[%s0 + $0x44] sm:$0xf]
    %v52 = vld [vmem:[%s0 + $0x48] sm:$0xf]
    %v53 = vld [vmem:[%s0 + $0x4c] sm:$0xf]
    %v54 = vld [vmem:[%s0 + $0x50] sm:$0xf]
    %v55 = vld [vmem:[%s0 + $0x54] sm:$0xf]
    %v56 = vld [vmem:[%s0 + $0x58] sm:$0xf]
    %v57 = vld [vmem:[%s0 + $0x5c] sm:$0xf]
    %v58 = vld [vmem:[%s0 + $0x60] sm:$0xf]
    %v59 = vld [vmem:[%s0 + $0x64] sm:$0xf]
    %v60 = vld [vmem:[%s0 + $0x68] sm:$0xf]
    %v61 = vld [vmem:[%s0 + $0x6c] sm:$0xf]
    %v62 = vld [vmem:[%s0 + $0x70] sm:$0xf]
    %v63 = vld [vmem:[%s0 + $0x74] sm:$0xf]
    %v64 = vld [vmem:[%s0 + $0x78] sm:$0xf]
    %v65 = vld [vmem:[%s0 + $0x7c] sm:$0xf]
    %v66 = vld [vmem:[%s0 + $0x80] sm:$0xf]
    %v67 = vld [vmem:[%s0 + $0x84] sm:$0xf]
    %v68 = vld [vmem:[%s0 + $0x88] sm:$0xf]
    %v69 = vld [vmem:[%s0 + $0x8c] sm:$0xf]
    %v70 = vld [vmem:[%s0 + $0x90] sm:$0xf]
    %v71 = vld [vmem:[%s0 + $0x94] sm:$0xf]
    %v72 = vld [vmem:[%s0 + $0x98] sm:$0xf]
    %v73 = vld [vmem:[%s0 + $0x9c] sm:$0xf]
    %v74 = vld [vmem:[%s0 + $0xa0] sm:$0xf]
    %v75 = vld [vmem:[%s0 + $0xa4] sm:$0xf]
    %v76 = vld [vmem:[%s0 + $0xa8] sm:$0xf]
    %v77 = vld [vmem:[%s0 + $0xac] sm:$0xf]
    %v78 = vld [vmem:[%s0 + $0xb0] sm:$0xf]
    %v79 = vld [vmem:[%s0 + $0xb4] sm:$0xf]
    %v80 = vld [vmem:[%s0 + $0xb8] sm:$0xf]
    %v81 = vld [vmem:[%s0 + $0xbc] sm:$0xf]
    %v82 = vld [vmem:[%s0 + $0xc0] sm:$0xf]
    %v83 = vld [vmem:[%s0 + $0xc4] sm:$0xf]
    %v84 = vld [vmem:[%s0 + $0xc8] sm:$0xf]
    %v85 = vld [vmem:[%s0 + $0xcc] sm:$0xf]
    %v86 = vld [vmem:[%s0 + $0xd0] sm:$0xf]
    %v87 = vld [vmem:[%s0 + $0xd4] sm:$0xf]
    %v88 = vld [vmem:[%s0 + $0xd8] sm:$0xf]
    %v89 = vld [vmem:[%s0 + $0xdc] sm:$0xf]
    %v90 = vld [vmem:[%s0 + $0xe0] sm:$0xf]
    %v91 = vld [vmem:[%s0 + $0xe4] sm:$0xf]
    %v92 = vld [vmem:[%s0 + $0xe8] sm:$0xf]
    %v93 = vld [vmem:[%s0 + $0xec] sm:$0xf]
    %v94 = vld [vmem:[%s0 + $0xf0] sm:$0xf]
    %v95 = vld [vmem:[%s0 + $0xf4] sm:$0xf]
    %v96 = vld [vmem:[%s0 + $0xf8] sm:$0xf]
    %v97 = vld [vmem:[%s0 + $0xfc] sm:$0xf]
    %v98 = vld [vmem:[%s1] sm:$0xf]
    %v99 = vld [vmem:[%s1 + $0x4] sm:$0xf]
    %v100 = vld [vmem:[%s1 + $0x8] sm:$0xf]
    %v101 = vld [vmem:[%s1 + $0xc] sm:$0xf]
    %v102 = vld [vmem:[%s2] sm:$0x1]
    %v104 = vlaneseq
    %v105 = vshrl.u32 %v104, 7
    %v106 = vsub.s32 0, %v105
    %v107 = vrot.slane %v102, %v106
    %v173 = vunpack.c.l.b16 %v34
    %v174 = vunpack.c.l.b16 %v35
    %v175 = vunpack.c.l.b16 %v36
    %v176 = vunpack.c.l.b16 %v37
    %v177 = vunpack.c.l.b16 %v38
    %v178 = vunpack.c.l.b16 %v39
    %v179 = vunpack.c.l.b16 %v40
    %v180 = vunpack.c.l.b16 %v41
    %v181 = vunpack.c.l.b16 %v42
    %v182 = vunpack.c.l.b16 %v43
    %v183 = vunpack.c.l.b16 %v44
    %v184 = vunpack.c.l.b16 %v45
    %v185 = vunpack.c.l.b16 %v46
    %v186 = vunpack.c.l.b16 %v47
    %v187 = vunpack.c.l.b16 %v48
    %v188 = vunpack.c.l.b16 %v49
    %v189 = vunpack.c.l.b16 %v50
    %v190 = vunpack.c.l.b16 %v51
    %v191 = vunpack.c.l.b16 %v52
    %v192 = vunpack.c.l.b16 %v53
    %v193 = vunpack.c.l.b16 %v54
    %v194 = vunpack.c.l.b16 %v55
    %v195 = vunpack.c.l.b16 %v56
    %v196 = vunpack.c.l.b16 %v57
    %v197 = vunpack.c.l.b16 %v58
    %v198 = vunpack.c.l.b16 %v59
    %v199 = vunpack.c.l.b16 %v60
    %v200 = vunpack.c.l.b16 %v61
    %v201 = vunpack.c.l.b16 %v62
    %v202 = vunpack.c.l.b16 %v63
    %v203 = vunpack.c.l.b16 %v64
    %v204 = vunpack.c.l.b16 %v65
    %v205 = vunpack.c.l.b16 %v66
    %v206 = vunpack.c.l.b16 %v67
    %v207 = vunpack.c.l.b16 %v68
    %v208 = vunpack.c.l.b16 %v69
    %v209 = vunpack.c.l.b16 %v70
    %v210 = vunpack.c.l.b16 %v71
    %v211 = vunpack.c.l.b16 %v72
    %v212 = vunpack.c.l.b16 %v73
    %v213 = vunpack.c.l.b16 %v74
    %v214 = vunpack.c.l.b16 %v75
    %v215 = vunpack.c.l.b16 %v76
    %v216 = vunpack.c.l.b16 %v77
    %v217 = vunpack.c.l.b16 %v78
    %v218 = vunpack.c.l.b16 %v79
    %v219 = vunpack.c.l.b16 %v80
    %v220 = vunpack.c.l.b16 %v81
    %v221 = vunpack.c.l.b16 %v82
    %v222 = vunpack.c.l.b16 %v83
    %v223 = vunpack.c.l.b16 %v84
    %v224 = vunpack.c.l.b16 %v85
    %v225 = vunpack.c.l.b16 %v86
    %v226 = vunpack.c.l.b16 %v87
    %v227 = vunpack.c.l.b16 %v88
    %v228 = vunpack.c.l.b16 %v89
    %v229 = vunpack.c.l.b16 %v90
    %v230 = vunpack.c.l.b16 %v91
    %v231 = vunpack.c.l.b16 %v92
    %v232 = vunpack.c.l.b16 %v93
    %v233 = vunpack.c.l.b16 %v94
    %v234 = vunpack.c.l.b16 %v95
    %v235 = vunpack.c.l.b16 %v96
    %v236 = vunpack.c.l.b16 %v97
    %v237 = vpack.c.b16 %v174, %v173
    %v238 = vpack.c.b16 %v176, %v175
    %v239 = vpack.c.b16 %v178, %v177
    %v240 = vpack.c.b16 %v180, %v179
    %v241 = vpack.c.b16 %v182, %v181
    %v242 = vpack.c.b16 %v184, %v183
    %v243 = vpack.c.b16 %v186, %v185
    %v244 = vpack.c.b16 %v188, %v187
    %v245 = vpack.c.b16 %v190, %v189
    %v246 = vpack.c.b16 %v192, %v191
    %v247 = vpack.c.b16 %v194, %v193
    %v248 = vpack.c.b16 %v196, %v195
    %v249 = vpack.c.b16 %v198, %v197
    %v250 = vpack.c.b16 %v200, %v199
    %v251 = vpack.c.b16 %v202, %v201
    %v252 = vpack.c.b16 %v204, %v203
    %v253 = vpack.c.b16 %v206, %v205
    %v254 = vpack.c.b16 %v208, %v207
    %v255 = vpack.c.b16 %v210, %v209
    %v256 = vpack.c.b16 %v212, %v211
    %v257 = vpack.c.b16 %v214, %v213
    %v258 = vpack.c.b16 %v216, %v215
    %v259 = vpack.c.b16 %v218, %v217
    %v260 = vpack.c.b16 %v220, %v219
    %v261 = vpack.c.b16 %v222, %v221
    %v262 = vpack.c.b16 %v224, %v223
    %v263 = vpack.c.b16 %v226, %v225
    %v264 = vpack.c.b16 %v228, %v227
    %v265 = vpack.c.b16 %v230, %v229
    %v266 = vpack.c.b16 %v232, %v231
    %v267 = vpack.c.b16 %v234, %v233
    %v268 = vpack.c.b16 %v236, %v235
    %v273 = vunpack.c.l.b16 %v98
    %v274 = vunpack.c.l.b16 %v99
    %v275 = vunpack.c.l.b16 %v100
    %v276 = vunpack.c.l.b16 %v101
    %v277 = vpack.c.b16 %v274, %v273
    %v278 = vpack.c.b16 %v276, %v275
    %vm281 = vcmask 261120
    %v283 = vsel %vm281, %v237, 0
    %v286 = vsel %vm281, %v238, 0
    %v289 = vsel %vm281, %v239, 0
    %v292 = vsel %vm281, %v240, 0
    %v295 = vsel %vm281, %v241, 0
    %v298 = vsel %vm281, %v242, 0
    %v301 = vsel %vm281, %v243, 0
    %v304 = vsel %vm281, %v244, 0
    %v307 = vsel %vm281, %v245, 0
    %v310 = vsel %vm281, %v246, 0
    %v313 = vsel %vm281, %v247, 0
    %v316 = vsel %vm281, %v248, 0
    %v319 = vsel %vm281, %v249, 0
    %v322 = vsel %vm281, %v250, 0
    %v325 = vsel %vm281, %v251, 0
    %v328 = vsel %vm281, %v252, 0
    %v331 = vsel %vm281, %v253, 0
    %v334 = vsel %vm281, %v254, 0
    %v337 = vsel %vm281, %v255, 0
    %v340 = vsel %vm281, %v256, 0
    %v343 = vsel %vm281, %v257, 0
    %v346 = vsel %vm281, %v258, 0
    %v349 = vsel %vm281, %v259, 0
    %v352 = vsel %vm281, %v260, 0
    %v355 = vsel %vm281, %v261, 0
    %v358 = vsel %vm281, %v262, 0
    %v361 = vsel %vm281, %v263, 0
    %v364 = vsel %vm281, %v264, 0
    %v367 = vsel %vm281, %v265, 0
    %v370 = vsel %vm281, %v266, 0
    %v373 = vsel %vm281, %v267, 0
    %v376 = vsel %vm281, %v268, 0
    %378 = vmatprep.subr.bf16.mxu0 0
    %379 = vmatpush1.bf16.msra.mxu0 %v277
    %380 = vmatprep.subr.bf16.mxu0 0
    %381 = vmatpush1.bf16.msra.mxu0 %v278
    %382 = vmatprep.subr.bf16.mxu0 0
    %383 = vmatpush1.bf16.msra.mxu0 0
    %384 = vmatprep.subr.bf16.mxu0 0
    %385 = vmatpush1.bf16.msra.mxu0 0
    %386 = vmatprep.subr.bf16.mxu0 0
    %387 = vmatpush1.bf16.msra.mxu0 0
    %388 = vmatprep.subr.bf16.mxu0 0
    %389 = vmatpush1.bf16.msra.mxu0 0
    %390 = vmatprep.subr.bf16.mxu0 0
    %391 = vmatpush1.bf16.msra.mxu0 0
    %392 = vmatprep.subr.bf16.mxu0 0
    %393 = vmatpush1.bf16.msra.mxu0 0
    %394 = vmatprep.subr.bf16.mxu0 0
    %395 = vmatpush1.bf16.msra.mxu0 0
    %396 = vmatprep.subr.bf16.mxu0 0
    %397 = vmatpush1.bf16.msra.mxu0 0
    %398 = vmatprep.subr.bf16.mxu0 0
    %399 = vmatpush1.bf16.msra.mxu0 0
    %400 = vmatprep.subr.bf16.mxu0 0
    %401 = vmatpush1.bf16.msra.mxu0 0
    %402 = vmatprep.subr.bf16.mxu0 0
    %403 = vmatpush1.bf16.msra.mxu0 0
    %404 = vmatprep.subr.bf16.mxu0 0
    %405 = vmatpush1.bf16.msra.mxu0 0
    %406 = vmatprep.subr.bf16.mxu0 0
    %407 = vmatpush1.bf16.msra.mxu0 0
    %408 = vmatprep.subr.bf16.mxu0 0
    %409 = vmatpush1.bf16.msra.mxu0 0
    %410 = vmatprep.mubr.bf16.mxu0 0
    %411 = vmatmul.mubr.bf16.gmra.mrb[0].mxu0 %v283
    %v412 = vpop.f32.mrb[0].mxu0
    %v413 = vadd.f32 %v107, %v412
    %v414 = vpop.f32.mrb[0].mxu0
    %v415 = vpop.f32.mrb[0].mxu0
    %v416 = vadd.f32 %v107, %v415
    %v417 = vpop.f32.mrb[0].mxu0
    %418 = vmatprep.mubr.bf16.mxu0 0
    %419 = vmatmul.mubr.bf16.gmra.mrb[0].mxu0 %v286
    %v420 = vpop.f32.mrb[0].mxu0
    %v421 = vadd.f32 %v107, %v420
    %v422 = vpop.f32.mrb[0].mxu0
    %v423 = vpop.f32.mrb[0].mxu0
    %v424 = vadd.f32 %v107, %v423
    %v425 = vpop.f32.mrb[0].mxu0
    %426 = vmatprep.mubr.bf16.mxu0 0
    %427 = vmatmul.mubr.bf16.gmra.mrb[0].mxu0 %v289
    %v428 = vpop.f32.mrb[0].mxu0
    %v429 = vadd.f32 %v107, %v428
    %v430 = vpop.f32.mrb[0].mxu0
    %v431 = vpop.f32.mrb[0].mxu0
    %v432 = vadd.f32 %v107, %v431
    %v433 = vpop.f32.mrb[0].mxu0
    %434 = vmatprep.mubr.bf16.mxu0 0
    %435 = vmatmul.mubr.bf16.gmra.mrb[0].mxu0 %v292
    %v436 = vpop.f32.mrb[0].mxu0
    %v437 = vadd.f32 %v107, %v436
    %v438 = vpop.f32.mrb[0].mxu0
    %v439 = vpop.f32.mrb[0].mxu0
    %v440 = vadd.f32 %v107, %v439
    %v441 = vpop.f32.mrb[0].mxu0
    %442 = vmatprep.mubr.bf16.mxu0 0
    %443 = vmatmul.mubr.bf16.gmra.mrb[0].mxu0 %v295
    %v444 = vpop.f32.mrb[0].mxu0
    %v445 = vadd.f32 %v107, %v444
    %v446 = vpop.f32.mrb[0].mxu0
    %v447 = vpop.f32.mrb[0].mxu0
    %v448 = vadd.f32 %v107, %v447
    %v449 = vpop.f32.mrb[0].mxu0
    %450 = vmatprep.mubr.bf16.mxu0 0
    %451 = vmatmul.mubr.bf16.gmra.mrb[0].mxu0 %v298
    %v452 = vpop.f32.mrb[0].mxu0
    %v453 = vadd.f32 %v107, %v452
    %v454 = vpop.f32.mrb[0].mxu0
    %v455 = vpop.f32.mrb[0].mxu0
    %v456 = vadd.f32 %v107, %v455
    %v457 = vpop.f32.mrb[0].mxu0
    %458 = vmatprep.mubr.bf16.mxu0 0
    %459 = vmatmul.mubr.bf16.gmra.mrb[0].mxu0 %v301
    %v460 = vpop.f32.mrb[0].mxu0
    %v461 = vadd.f32 %v107, %v460
    %v462 = vpop.f32.mrb[0].mxu0
    %v463 = vpop.f32.mrb[0].mxu0
    %v464 = vadd.f32 %v107, %v463
    %v465 = vpop.f32.mrb[0].mxu0
    %466 = vmatprep.mubr.bf16.mxu0 0
    %467 = vmatmul.mubr.bf16.gmra.mrb[0].mxu0 %v304
    %v468 = vpop.f32.mrb[0].mxu0
    %v469 = vadd.f32 %v107, %v468
    %v470 = vpop.f32.mrb[0].mxu0
    %v471 = vpop.f32.mrb[0].mxu0
    %v472 = vadd.f32 %v107, %v471
    %v473 = vpop.f32.mrb[0].mxu0
    %474 = vmatprep.mubr.bf16.mxu0 0
    %475 = vmatmul.mubr.bf16.gmra.mrb[0].mxu0 %v307
    %v476 = vpop.f32.mrb[0].mxu0
    %v477 = vadd.f32 %v107, %v476
    %v478 = vpop.f32.mrb[0].mxu0
    %v479 = vpop.f32.mrb[0].mxu0
    %v480 = vadd.f32 %v107, %v479
    %v481 = vpop.f32.mrb[0].mxu0
    %482 = vmatprep.mubr.bf16.mxu0 0
    %483 = vmatmul.mubr.bf16.gmra.mrb[0].mxu0 %v310
    %v484 = vpop.f32.mrb[0].mxu0
    %v485 = vadd.f32 %v107, %v484
    %v486 = vpop.f32.mrb[0].mxu0
    %v487 = vpop.f32.mrb[0].mxu0
    %v488 = vadd.f32 %v107, %v487
    %v489 = vpop.f32.mrb[0].mxu0
    %490 = vmatprep.mubr.bf16.mxu0 0
    %491 = vmatmul.mubr.bf16.gmra.mrb[0].mxu0 %v313
    %v492 = vpop.f32.mrb[0].mxu0
    %v493 = vadd.f32 %v107, %v492
    %v494 = vpop.f32.mrb[0].mxu0
    %v495 = vpop.f32.mrb[0].mxu0
    %v496 = vadd.f32 %v107, %v495
    %v497 = vpop.f32.mrb[0].mxu0
    %498 = vmatprep.mubr.bf16.mxu0 0
    %499 = vmatmul.mubr.bf16.gmra.mrb[0].mxu0 %v316
    %v500 = vpop.f32.mrb[0].mxu0
    %v501 = vadd.f32 %v107, %v500
    %v502 = vpop.f32.mrb[0].mxu0
    %v503 = vpop.f32.mrb[0].mxu0
    %v504 = vadd.f32 %v107, %v503
    %v505 = vpop.f32.mrb[0].mxu0
    %506 = vmatprep.mubr.bf16.mxu0 0
    %507 = vmatmul.mubr.bf16.gmra.mrb[0].mxu0 %v319
    %v508 = vpop.f32.mrb[0].mxu0
    %v509 = vadd.f32 %v107, %v508
    %v510 = vpop.f32.mrb[0].mxu0
    %v511 = vpop.f32.mrb[0].mxu0
    %v512 = vadd.f32 %v107, %v511
    %v513 = vpop.f32.mrb[0].mxu0
    %514 = vmatprep.mubr.bf16.mxu0 0
    %515 = vmatmul.mubr.bf16.gmra.mrb[0].mxu0 %v322
    %v516 = vpop.f32.mrb[0].mxu0
    %v517 = vadd.f32 %v107, %v516
    %v518 = vpop.f32.mrb[0].mxu0
    %v519 = vpop.f32.mrb[0].mxu0
    %v520 = vadd.f32 %v107, %v519
    %v521 = vpop.f32.mrb[0].mxu0
    %522 = vmatprep.mubr.bf16.mxu0 0
    %523 = vmatmul.mubr.bf16.gmra.mrb[0].mxu0 %v325
    %v524 = vpop.f32.mrb[0].mxu0
    %v525 = vadd.f32 %v107, %v524
    %v526 = vpop.f32.mrb[0].mxu0
    %v527 = vpop.f32.mrb[0].mxu0
    %v528 = vadd.f32 %v107, %v527
    %v529 = vpop.f32.mrb[0].mxu0
    %530 = vmatprep.mubr.bf16.mxu0 0
    %531 = vmatmul.mubr.bf16.gmra.mrb[0].mxu0 %v328
    %v532 = vpop.f32.mrb[0].mxu0
    %v533 = vadd.f32 %v107, %v532
    %v534 = vpop.f32.mrb[0].mxu0
    %v535 = vpop.f32.mrb[0].mxu0
    %v536 = vadd.f32 %v107, %v535
    %v537 = vpop.f32.mrb[0].mxu0
    %538 = vmatprep.mubr.bf16.mxu0 0
    %539 = vmatmul.mubr.bf16.gmra.mrb[0].mxu0 %v331
    %v540 = vpop.f32.mrb[0].mxu0
    %v541 = vadd.f32 %v107, %v540
    %v542 = vpop.f32.mrb[0].mxu0
    %v543 = vpop.f32.mrb[0].mxu0
    %v544 = vadd.f32 %v107, %v543
    %v545 = vpop.f32.mrb[0].mxu0
    %546 = vmatprep.mubr.bf16.mxu0 0
    %547 = vmatmul.mubr.bf16.gmra.mrb[0].mxu0 %v334
    %v548 = vpop.f32.mrb[0].mxu0
    %v549 = vadd.f32 %v107, %v548
    %v550 = vpop.f32.mrb[0].mxu0
    %v551 = vpop.f32.mrb[0].mxu0
    %v552 = vadd.f32 %v107, %v551
    %v553 = vpop.f32.mrb[0].mxu0
    %554 = vmatprep.mubr.bf16.mxu0 0
    %555 = vmatmul.mubr.bf16.gmra.mrb[0].mxu0 %v337
    %v556 = vpop.f32.mrb[0].mxu0
    %v557 = vadd.f32 %v107, %v556
    %v558 = vpop.f32.mrb[0].mxu0
    %v559 = vpop.f32.mrb[0].mxu0
    %v560 = vadd.f32 %v107, %v559
    %v561 = vpop.f32.mrb[0].mxu0
    %562 = vmatprep.mubr.bf16.mxu0 0
    %563 = vmatmul.mubr.bf16.gmra.mrb[0].mxu0 %v340
    %v564 = vpop.f32.mrb[0].mxu0
    %v565 = vadd.f32 %v107, %v564
    %v566 = vpop.f32.mrb[0].mxu0
    %v567 = vpop.f32.mrb[0].mxu0
    %v568 = vadd.f32 %v107, %v567
    %v569 = vpop.f32.mrb[0].mxu0
    %570 = vmatprep.mubr.bf16.mxu0 0
    %571 = vmatmul.mubr.bf16.gmra.mrb[0].mxu0 %v343
    %v572 = vpop.f32.mrb[0].mxu0
    %v573 = vadd.f32 %v107, %v572
    %v574 = vpop.f32.mrb[0].mxu0
    %v575 = vpop.f32.mrb[0].mxu0
    %v576 = vadd.f32 %v107, %v575
    %v577 = vpop.f32.mrb[0].mxu0
    %578 = vmatprep.mubr.bf16.mxu0 0
    %579 = vmatmul.mubr.bf16.gmra.mrb[0].mxu0 %v346
    %v580 = vpop.f32.mrb[0].mxu0
    %v581 = vadd.f32 %v107, %v580
    %v582 = vpop.f32.mrb[0].mxu0
    %v583 = vpop.f32.mrb[0].mxu0
    %v584 = vadd.f32 %v107, %v583
    %v585 = vpop.f32.mrb[0].mxu0
    %586 = vmatprep.mubr.bf16.mxu0 0
    %587 = vmatmul.mubr.bf16.gmra.mrb[0].mxu0 %v349
    %v588 = vpop.f32.mrb[0].mxu0
    %v589 = vadd.f32 %v107, %v588
    %v590 = vpop.f32.mrb[0].mxu0
    %v591 = vpop.f32.mrb[0].mxu0
    %v592 = vadd.f32 %v107, %v591
    %v593 = vpop.f32.mrb[0].mxu0
    %594 = vmatprep.mubr.bf16.mxu0 0
    %595 = vmatmul.mubr.bf16.gmra.mrb[0].mxu0 %v352
    %v596 = vpop.f32.mrb[0].mxu0
    %v597 = vadd.f32 %v107, %v596
    %v598 = vpop.f32.mrb[0].mxu0
    %v599 = vpop.f32.mrb[0].mxu0
    %v600 = vadd.f32 %v107, %v599
    %v601 = vpop.f32.mrb[0].mxu0
    %602 = vmatprep.mubr.bf16.mxu0 0
    %603 = vmatmul.mubr.bf16.gmra.mrb[0].mxu0 %v355
    %v604 = vpop.f32.mrb[0].mxu0
    %v605 = vadd.f32 %v107, %v604
    %v606 = vpop.f32.mrb[0].mxu0
    %v607 = vpop.f32.mrb[0].mxu0
    %v608 = vadd.f32 %v107, %v607
    %v609 = vpop.f32.mrb[0].mxu0
    %610 = vmatprep.mubr.bf16.mxu0 0
    %611 = vmatmul.mubr.bf16.gmra.mrb[0].mxu0 %v358
    %v612 = vpop.f32.mrb[0].mxu0
    %v613 = vadd.f32 %v107, %v612
    %v614 = vpop.f32.mrb[0].mxu0
    %v615 = vpop.f32.mrb[0].mxu0
    %v616 = vadd.f32 %v107, %v615
    %v617 = vpop.f32.mrb[0].mxu0
    %618 = vmatprep.mubr.bf16.mxu0 0
    %619 = vmatmul.mubr.bf16.gmra.mrb[0].mxu0 %v361
    %v620 = vpop.f32.mrb[0].mxu0
    %v621 = vadd.f32 %v107, %v620
    %v622 = vpop.f32.mrb[0].mxu0
    %v623 = vpop.f32.mrb[0].mxu0
    %v624 = vadd.f32 %v107, %v623
    %v625 = vpop.f32.mrb[0].mxu0
    %626 = vmatprep.mubr.bf16.mxu0 0
    %627 = vmatmul.mubr.bf16.gmra.mrb[0].mxu0 %v364
    %v628 = vpop.f32.mrb[0].mxu0
    %v629 = vadd.f32 %v107, %v628
    %v630 = vpop.f32.mrb[0].mxu0
    %v631 = vpop.f32.mrb[0].mxu0
    %v632 = vadd.f32 %v107, %v631
    %v633 = vpop.f32.mrb[0].mxu0
    %634 = vmatprep.mubr.bf16.mxu0 0
    %635 = vmatmul.mubr.bf16.gmra.mrb[0].mxu0 %v367
    %v636 = vpop.f32.mrb[0].mxu0
    %v637 = vadd.f32 %v107, %v636
    %v638 = vpop.f32.mrb[0].mxu0
    %v639 = vpop.f32.mrb[0].mxu0
    %v640 = vadd.f32 %v107, %v639
    %v641 = vpop.f32.mrb[0].mxu0
    %642 = vmatprep.mubr.bf16.mxu0 0
    %643 = vmatmul.mubr.bf16.gmra.mrb[0].mxu0 %v370
    %v644 = vpop.f32.mrb[0].mxu0
    %v645 = vadd.f32 %v107, %v644
    %v646 = vpop.f32.mrb[0].mxu0
    %v647 = vpop.f32.mrb[0].mxu0
    %v648 = vadd.f32 %v107, %v647
    %v649 = vpop.f32.mrb[0].mxu0
    %650 = vmatprep.mubr.bf16.mxu0 0
    %651 = vmatmul.mubr.bf16.gmra.mrb[0].mxu0 %v373
    %v652 = vpop.f32.mrb[0].mxu0
    %v653 = vadd.f32 %v107, %v652
    %v654 = vpop.f32.mrb[0].mxu0
    %v655 = vpop.f32.mrb[0].mxu0
    %v656 = vadd.f32 %v107, %v655
    %v657 = vpop.f32.mrb[0].mxu0
    %658 = vmatprep.mubr.bf16.mxu0 0
    %659 = vmatmul.mubr.bf16.gmra.mrb[0].mxu0 %v376
    %v660 = vpop.f32.mrb[0].mxu0
    %v661 = vadd.f32 %v107, %v660
    %v662 = vpop.f32.mrb[0].mxu0
    %v663 = vpop.f32.mrb[0].mxu0
    %v664 = vadd.f32 %v107, %v663
    %v665 = vpop.f32.mrb[0].mxu0
    %666 = vdwg.mxu0
    %v667 = vpack.c.bf16 %v416, %v413
    %v668 = vpack.c.bf16 %v424, %v421
    %v669 = vpack.c.bf16 %v432, %v429
    %v670 = vpack.c.bf16 %v440, %v437
    %v671 = vpack.c.bf16 %v448, %v445
    %v672 = vpack.c.bf16 %v456, %v453
    %v673 = vpack.c.bf16 %v464, %v461
    %v674 = vpack.c.bf16 %v472, %v469
    %v675 = vpack.c.bf16 %v480, %v477
    %v676 = vpack.c.bf16 %v488, %v485
    %v677 = vpack.c.bf16 %v496, %v493
    %v678 = vpack.c.bf16 %v504, %v501
    %v679 = vpack.c.bf16 %v512, %v509
    %v680 = vpack.c.bf16 %v520, %v517
    %v681 = vpack.c.bf16 %v528, %v525
    %v682 = vpack.c.bf16 %v536, %v533
    %v683 = vpack.c.bf16 %v544, %v541
    %v684 = vpack.c.bf16 %v552, %v549
    %v685 = vpack.c.bf16 %v560, %v557
    %v686 = vpack.c.bf16 %v568, %v565
    %v687 = vpack.c.bf16 %v576, %v573
    %v688 = vpack.c.bf16 %v584, %v581
    %v689 = vpack.c.bf16 %v592, %v589
    %v690 = vpack.c.bf16 %v600, %v597
    %v691 = vpack.c.bf16 %v608, %v605
    %v692 = vpack.c.bf16 %v616, %v613
    %v693 = vpack.c.bf16 %v624, %v621
    %v694 = vpack.c.bf16 %v632, %v629
    %v695 = vpack.c.bf16 %v640, %v637
    %v696 = vpack.c.bf16 %v648, %v645
    %v697 = vpack.c.bf16 %v656, %v653
    %v698 = vpack.c.bf16 %v664, %v661
    %v699 = vxor.u32 %v667, 2147516416
    %v700 = vxor.u32 %v668, 2147516416
    %v701 = vxor.u32 %v669, 2147516416
    %v702 = vxor.u32 %v670, 2147516416
    %v703 = vxor.u32 %v671, 2147516416
    %v704 = vxor.u32 %v672, 2147516416
    %v705 = vxor.u32 %v673, 2147516416
    %v706 = vxor.u32 %v674, 2147516416
    %v707 = vxor.u32 %v675, 2147516416
    %v708 = vxor.u32 %v676, 2147516416
    %v709 = vxor.u32 %v677, 2147516416
    %v710 = vxor.u32 %v678, 2147516416
    %v711 = vxor.u32 %v679, 2147516416
    %v712 = vxor.u32 %v680, 2147516416
    %v713 = vxor.u32 %v681, 2147516416
    %v714 = vxor.u32 %v682, 2147516416
    %v715 = vxor.u32 %v683, 2147516416
    %v716 = vxor.u32 %v684, 2147516416
    %v717 = vxor.u32 %v685, 2147516416
    %v718 = vxor.u32 %v686, 2147516416
    %v719 = vxor.u32 %v687, 2147516416
    %v720 = vxor.u32 %v688, 2147516416
    %v721 = vxor.u32 %v689, 2147516416
    %v722 = vxor.u32 %v690, 2147516416
    %v723 = vxor.u32 %v691, 2147516416
    %v724 = vxor.u32 %v692, 2147516416
    %v725 = vxor.u32 %v693, 2147516416
    %v726 = vxor.u32 %v694, 2147516416
    %v727 = vxor.u32 %v695, 2147516416
    %v728 = vxor.u32 %v696, 2147516416
    %v729 = vxor.u32 %v697, 2147516416
    %v730 = vxor.u32 %v698, 2147516416
    %v732 = vmul.bf16 %v699, 1069105081
    %v733 = vpow.bf16.pop %v732
    %v735 = vmul.bf16 %v700, 1069105081
    %v736 = vpow.bf16.pop %v735
    %v738 = vmul.bf16 %v701, 1069105081
    %v739 = vpow.bf16.pop %v738
    %v741 = vmul.bf16 %v702, 1069105081
    %v742 = vpow.bf16.pop %v741
    %v744 = vmul.bf16 %v703, 1069105081
    %v745 = vpow.bf16.pop %v744
    %v747 = vmul.bf16 %v704, 1069105081
    %v748 = vpow.bf16.pop %v747
    %v750 = vmul.bf16 %v705, 1069105081
    %v751 = vpow.bf16.pop %v750
    %v753 = vmul.bf16 %v706, 1069105081
    %v754 = vpow.bf16.pop %v753
    %v756 = vmul.bf16 %v707, 1069105081
    %v757 = vpow.bf16.pop %v756
    %v759 = vmul.bf16 %v708, 1069105081
    %v760 = vpow.bf16.pop %v759
    %v762 = vmul.bf16 %v709, 1069105081
    %v763 = vpow.bf16.pop %v762
    %v765 = vmul.bf16 %v710, 1069105081
    %v766 = vpow.bf16.pop %v765
    %v768 = vmul.bf16 %v711, 1069105081
    %v769 = vpow.bf16.pop %v768
    %v771 = vmul.bf16 %v712, 1069105081
    %v772 = vpow.bf16.pop %v771
    %v774 = vmul.bf16 %v713, 1069105081
    %v775 = vpow.bf16.pop %v774
    %v777 = vmul.bf16 %v714, 1069105081
    %v778 = vpow.bf16.pop %v777
    %v780 = vmul.bf16 %v715, 1069105081
    %v781 = vpow.bf16.pop %v780
    %v783 = vmul.bf16 %v716, 1069105081
    %v784 = vpow.bf16.pop %v783
    %v786 = vmul.bf16 %v717, 1069105081
    %v787 = vpow.bf16.pop %v786
    %v789 = vmul.bf16 %v718, 1069105081
    %v790 = vpow.bf16.pop %v789
    %v792 = vmul.bf16 %v719, 1069105081
    %v793 = vpow.bf16.pop %v792
    %v795 = vmul.bf16 %v720, 1069105081
    %v796 = vpow.bf16.pop %v795
    %v798 = vmul.bf16 %v721, 1069105081
    %v799 = vpow.bf16.pop %v798
    %v801 = vmul.bf16 %v722, 1069105081
    %v802 = vpow.bf16.pop %v801
    %v804 = vmul.bf16 %v723, 1069105081
    %v805 = vpow.bf16.pop %v804
    %v807 = vmul.bf16 %v724, 1069105081
    %v808 = vpow.bf16.pop %v807
    %v810 = vmul.bf16 %v725, 1069105081
    %v811 = vpow.bf16.pop %v810
    %v813 = vmul.bf16 %v726, 1069105081
    %v814 = vpow.bf16.pop %v813
    %v816 = vmul.bf16 %v727, 1069105081
    %v817 = vpow.bf16.pop %v816
    %v819 = vmul.bf16 %v728, 1069105081
    %v820 = vpow.bf16.pop %v819
    %v822 = vmul.bf16 %v729, 1069105081
    %v823 = vpow.bf16.pop %v822
    %v825 = vmul.bf16 %v730, 1069105081
    %v826 = vpow.bf16.pop %v825
    %v827 = vadd.bf16 %v733, 1065369472
    %v828 = vadd.bf16 %v736, 1065369472
    %v829 = vadd.bf16 %v739, 1065369472
    %v830 = vadd.bf16 %v742, 1065369472
    %v831 = vadd.bf16 %v745, 1065369472
    %v832 = vadd.bf16 %v748, 1065369472
    %v833 = vadd.bf16 %v751, 1065369472
    %v834 = vadd.bf16 %v754, 1065369472
    %v835 = vadd.bf16 %v757, 1065369472
    %v836 = vadd.bf16 %v760, 1065369472
    %v837 = vadd.bf16 %v763, 1065369472
    %v838 = vadd.bf16 %v766, 1065369472
    %v839 = vadd.bf16 %v769, 1065369472
    %v840 = vadd.bf16 %v772, 1065369472
    %v841 = vadd.bf16 %v775, 1065369472
    %v842 = vadd.bf16 %v778, 1065369472
    %v843 = vadd.bf16 %v781, 1065369472
    %v844 = vadd.bf16 %v784, 1065369472
    %v845 = vadd.bf16 %v787, 1065369472
    %v846 = vadd.bf16 %v790, 1065369472
    %v847 = vadd.bf16 %v793, 1065369472
    %v848 = vadd.bf16 %v796, 1065369472
    %v849 = vadd.bf16 %v799, 1065369472
    %v850 = vadd.bf16 %v802, 1065369472
    %v851 = vadd.bf16 %v805, 1065369472
    %v852 = vadd.bf16 %v808, 1065369472
    %v853 = vadd.bf16 %v811, 1065369472
    %v854 = vadd.bf16 %v814, 1065369472
    %v855 = vadd.bf16 %v817, 1065369472
    %v856 = vadd.bf16 %v820, 1065369472
    %v857 = vadd.bf16 %v823, 1065369472
    %v858 = vadd.bf16 %v826, 1065369472
    %v859 = vrcp.bf16.pop %v827
    %v860 = vmul.bf16 1065369472, %v859
    %v861 = vrcp.bf16.pop %v828
    %v862 = vmul.bf16 1065369472, %v861
    %v863 = vrcp.bf16.pop %v829
    %v864 = vmul.bf16 1065369472, %v863
    %v865 = vrcp.bf16.pop %v830
    %v866 = vmul.bf16 1065369472, %v865
    %v867 = vrcp.bf16.pop %v831
    %v868 = vmul.bf16 1065369472, %v867
    %v869 = vrcp.bf16.pop %v832
    %v870 = vmul.bf16 1065369472, %v869
    %v871 = vrcp.bf16.pop %v833
    %v872 = vmul.bf16 1065369472, %v871
    %v873 = vrcp.bf16.pop %v834
    %v874 = vmul.bf16 1065369472, %v873
    %v875 = vrcp.bf16.pop %v835
    %v876 = vmul.bf16 1065369472, %v875
    %v877 = vrcp.bf16.pop %v836
    %v878 = vmul.bf16 1065369472, %v877
    %v879 = vrcp.bf16.pop %v837
    %v880 = vmul.bf16 1065369472, %v879
    %v881 = vrcp.bf16.pop %v838
    %v882 = vmul.bf16 1065369472, %v881
    %v883 = vrcp.bf16.pop %v839
    %v884 = vmul.bf16 1065369472, %v883
    %v885 = vrcp.bf16.pop %v840
    %v886 = vmul.bf16 1065369472, %v885
    %v887 = vrcp.bf16.pop %v841
    %v888 = vmul.bf16 1065369472, %v887
    %v889 = vrcp.bf16.pop %v842
    %v890 = vmul.bf16 1065369472, %v889
    %v891 = vrcp.bf16.pop %v843
    %v892 = vmul.bf16 1065369472, %v891
    %v893 = vrcp.bf16.pop %v844
    %v894 = vmul.bf16 1065369472, %v893
    %v895 = vrcp.bf16.pop %v845
    %v896 = vmul.bf16 1065369472, %v895
    %v897 = vrcp.bf16.pop %v846
    %v898 = vmul.bf16 1065369472, %v897
    %v899 = vrcp.bf16.pop %v847
    %v900 = vmul.bf16 1065369472, %v899
    %v901 = vrcp.bf16.pop %v848
    %v902 = vmul.bf16 1065369472, %v901
    %v903 = vrcp.bf16.pop %v849
    %v904 = vmul.bf16 1065369472, %v903
    %v905 = vrcp.bf16.pop %v850
    %v906 = vmul.bf16 1065369472, %v905
    %v907 = vrcp.bf16.pop %v851
    %v908 = vmul.bf16 1065369472, %v907
    %v909 = vrcp.bf16.pop %v852
    %v910 = vmul.bf16 1065369472, %v909
    %v911 = vrcp.bf16.pop %v853
    %v912 = vmul.bf16 1065369472, %v911
    %v913 = vrcp.bf16.pop %v854
    %v914 = vmul.bf16 1065369472, %v913
    %v915 = vrcp.bf16.pop %v855
    %v916 = vmul.bf16 1065369472, %v915
    %v917 = vrcp.bf16.pop %v856
    %v918 = vmul.bf16 1065369472, %v917
    %v919 = vrcp.bf16.pop %v857
    %v920 = vmul.bf16 1065369472, %v919
    %v921 = vrcp.bf16.pop %v858
    %v922 = vmul.bf16 1065369472, %v921
    %v923 = vmul.bf16 %v667, %v860
    %v924 = vmul.bf16 %v668, %v862
    %v925 = vmul.bf16 %v669, %v864
    %v926 = vmul.bf16 %v670, %v866
    %v927 = vmul.bf16 %v671, %v868
    %v928 = vmul.bf16 %v672, %v870
    %v929 = vmul.bf16 %v673, %v872
    %v930 = vmul.bf16 %v674, %v874
    %v931 = vmul.bf16 %v675, %v876
    %v932 = vmul.bf16 %v676, %v878
    %v933 = vmul.bf16 %v677, %v880
    %v934 = vmul.bf16 %v678, %v882
    %v935 = vmul.bf16 %v679, %v884
    %v936 = vmul.bf16 %v680, %v886
    %v937 = vmul.bf16 %v681, %v888
    %v938 = vmul.bf16 %v682, %v890
    %v939 = vmul.bf16 %v683, %v892
    %v940 = vmul.bf16 %v684, %v894
    %v941 = vmul.bf16 %v685, %v896
    %v942 = vmul.bf16 %v686, %v898
    %v943 = vmul.bf16 %v687, %v900
    %v944 = vmul.bf16 %v688, %v902
    %v945 = vmul.bf16 %v689, %v904
    %v946 = vmul.bf16 %v690, %v906
    %v947 = vmul.bf16 %v691, %v908
    %v948 = vmul.bf16 %v692, %v910
    %v949 = vmul.bf16 %v693, %v912
    %v950 = vmul.bf16 %v694, %v914
    %v951 = vmul.bf16 %v695, %v916
    %v952 = vmul.bf16 %v696, %v918
    %v953 = vmul.bf16 %v697, %v920
    %v954 = vmul.bf16 %v698, %v922
    %v955 = vld [vmem:[%s3] sm:$0xf]
    %v956 = vld [vmem:[%s3 + $0x4] sm:$0xf]
    %v957 = vld [vmem:[%s3 + $0x8] sm:$0xf]
    %v958 = vld [vmem:[%s3 + $0xc] sm:$0xf]
    %v959 = vld [vmem:[%s3 + $0x10] sm:$0xf]
    %v960 = vld [vmem:[%s3 + $0x14] sm:$0xf]
    %v961 = vld [vmem:[%s3 + $0x18] sm:$0xf]
    %v962 = vld [vmem:[%s3 + $0x1c] sm:$0xf]
    %v963 = vld [vmem:[%s3 + $0x20] sm:$0xf]
    %v964 = vld [vmem:[%s3 + $0x24] sm:$0xf]
    %v965 = vld [vmem:[%s3 + $0x28] sm:$0xf]
    %v966 = vld [vmem:[%s3 + $0x2c] sm:$0xf]
    %v967 = vld [vmem:[%s3 + $0x30] sm:$0xf]
    %v968 = vld [vmem:[%s3 + $0x34] sm:$0xf]
    %v969 = vld [vmem:[%s3 + $0x38] sm:$0xf]
    %v970 = vld [vmem:[%s3 + $0x3c] sm:$0xf]
    %v971 = vld [vmem:[%s4] sm:$0x1]
    %v973 = vlaneseq
    %v974 = vshrl.u32 %v973, 7
    %v975 = vsub.s32 0, %v974
    %v976 = vrot.slane %v971, %v975
    %v994 = vunpack.c.l.b16 %v955
    %v995 = vunpack.c.l.b16 %v956
    %v996 = vunpack.c.l.b16 %v957
    %v997 = vunpack.c.l.b16 %v958
    %v998 = vunpack.c.l.b16 %v959
    %v999 = vunpack.c.l.b16 %v960
    %v1000 = vunpack.c.l.b16 %v961
    %v1001 = vunpack.c.l.b16 %v962
    %v1002 = vunpack.c.l.b16 %v963
    %v1003 = vunpack.c.l.b16 %v964
    %v1004 = vunpack.c.l.b16 %v965
    %v1005 = vunpack.c.l.b16 %v966
    %v1006 = vunpack.c.l.b16 %v967
    %v1007 = vunpack.c.l.b16 %v968
    %v1008 = vunpack.c.l.b16 %v969
    %v1009 = vunpack.c.l.b16 %v970
    %v1010 = vpack.c.b16 %v995, %v994
    %v1011 = vpack.c.b16 %v997, %v996
    %v1012 = vpack.c.b16 %v999, %v998
    %v1013 = vpack.c.b16 %v1001, %v1000
    %v1014 = vpack.c.b16 %v1003, %v1002
    %v1015 = vpack.c.b16 %v1005, %v1004
    %v1016 = vpack.c.b16 %v1007, %v1006
    %v1017 = vpack.c.b16 %v1009, %v1008
    %1026 = vmatprep.subr.bf16.mxu0 0
    %1027 = vmatpush1.bf16.msra.mxu0 %v1010
    %1028 = vmatprep.subr.bf16.mxu0 0
    %1029 = vmatpush1.bf16.msra.mxu0 %v1011
    %1030 = vmatprep.subr.bf16.mxu0 0
    %1031 = vmatpush1.bf16.msra.mxu0 %v1012
    %1032 = vmatprep.subr.bf16.mxu0 0
    %1033 = vmatpush1.bf16.msra.mxu0 %v1013
    %1034 = vmatprep.subr.bf16.mxu0 0
    %1035 = vmatpush1.bf16.msra.mxu0 %v1014
    %1036 = vmatprep.subr.bf16.mxu0 0
    %1037 = vmatpush1.bf16.msra.mxu0 %v1015
    %1038 = vmatprep.subr.bf16.mxu0 0
    %1039 = vmatpush1.bf16.msra.mxu0 %v1016
    %1040 = vmatprep.subr.bf16.mxu0 0
    %1041 = vmatpush1.bf16.msra.mxu0 %v1017
    %1042 = vmatprep.subr.bf16.mxu0 0
    %1043 = vmatpush1.bf16.msra.mxu0 0
    %1044 = vmatprep.subr.bf16.mxu0 0
    %1045 = vmatpush1.bf16.msra.mxu0 0
    %1046 = vmatprep.subr.bf16.mxu0 0
    %1047 = vmatpush1.bf16.msra.mxu0 0
    %1048 = vmatprep.subr.bf16.mxu0 0
    %1049 = vmatpush1.bf16.msra.mxu0 0
    %1050 = vmatprep.subr.bf16.mxu0 0
    %1051 = vmatpush1.bf16.msra.mxu0 0
    %1052 = vmatprep.subr.bf16.mxu0 0
    %1053 = vmatpush1.bf16.msra.mxu0 0
    %1054 = vmatprep.subr.bf16.mxu0 0
    %1055 = vmatpush1.bf16.msra.mxu0 0
    %1056 = vmatprep.subr.bf16.mxu0 0
    %1057 = vmatpush1.bf16.msra.mxu0 0
    %1058 = vmatprep.mubr.bf16.mxu0 0
    %1059 = vmatmul.mubr.bf16.gmra.mrb[0].mxu0 %v923
    %v1060 = vpop.f32.mrb[0].mxu0
    %v1061 = vadd.f32 %v976, %v1060
    %v1062 = vpop.f32.mrb[0].mxu0
    %v1063 = vpop.f32.mrb[0].mxu0
    %v1064 = vadd.f32 %v976, %v1063
    %v1065 = vpop.f32.mrb[0].mxu0
    %1066 = vmatprep.mubr.bf16.mxu0 0
    %1067 = vmatmul.mubr.bf16.gmra.mrb[0].mxu0 %v924
    %v1068 = vpop.f32.mrb[0].mxu0
    %v1069 = vadd.f32 %v976, %v1068
    %v1070 = vpop.f32.mrb[0].mxu0
    %v1071 = vpop.f32.mrb[0].mxu0
    %v1072 = vadd.f32 %v976, %v1071
    %v1073 = vpop.f32.mrb[0].mxu0
    %1074 = vmatprep.mubr.bf16.mxu0 0
    %1075 = vmatmul.mubr.bf16.gmra.mrb[0].mxu0 %v925
    %v1076 = vpop.f32.mrb[0].mxu0
    %v1077 = vadd.f32 %v976, %v1076
    %v1078 = vpop.f32.mrb[0].mxu0
    %v1079 = vpop.f32.mrb[0].mxu0
    %v1080 = vadd.f32 %v976, %v1079
    %v1081 = vpop.f32.mrb[0].mxu0
    %1082 = vmatprep.mubr.bf16.mxu0 0
    %1083 = vmatmul.mubr.bf16.gmra.mrb[0].mxu0 %v926
    %v1084 = vpop.f32.mrb[0].mxu0
    %v1085 = vadd.f32 %v976, %v1084
    %v1086 = vpop.f32.mrb[0].mxu0
    %v1087 = vpop.f32.mrb[0].mxu0
    %v1088 = vadd.f32 %v976, %v1087
    %v1089 = vpop.f32.mrb[0].mxu0
    %1090 = vmatprep.mubr.bf16.mxu0 0
    %1091 = vmatmul.mubr.bf16.gmra.mrb[0].mxu0 %v927
    %v1092 = vpop.f32.mrb[0].mxu0
    %v1093 = vadd.f32 %v976, %v1092
    %v1094 = vpop.f32.mrb[0].mxu0
    %v1095 = vpop.f32.mrb[0].mxu0
    %v1096 = vadd.f32 %v976, %v1095
    %v1097 = vpop.f32.mrb[0].mxu0
    %1098 = vmatprep.mubr.bf16.mxu0 0
    %1099 = vmatmul.mubr.bf16.gmra.mrb[0].mxu0 %v928
    %v1100 = vpop.f32.mrb[0].mxu0
    %v1101 = vadd.f32 %v976, %v1100
    %v1102 = vpop.f32.mrb[0].mxu0
    %v1103 = vpop.f32.mrb[0].mxu0
    %v1104 = vadd.f32 %v976, %v1103
    %v1105 = vpop.f32.mrb[0].mxu0
    %1106 = vmatprep.mubr.bf16.mxu0 0
    %1107 = vmatmul.mubr.bf16.gmra.mrb[0].mxu0 %v929
    %v1108 = vpop.f32.mrb[0].mxu0
    %v1109 = vadd.f32 %v976, %v1108
    %v1110 = vpop.f32.mrb[0].mxu0
    %v1111 = vpop.f32.mrb[0].mxu0
    %v1112 = vadd.f32 %v976, %v1111
    %v1113 = vpop.f32.mrb[0].mxu0
    %1114 = vmatprep.mubr.bf16.mxu0 0
    %1115 = vmatmul.mubr.bf16.gmra.mrb[0].mxu0 %v930
    %v1116 = vpop.f32.mrb[0].mxu0
    %v1117 = vadd.f32 %v976, %v1116
    %v1118 = vpop.f32.mrb[0].mxu0
    %v1119 = vpop.f32.mrb[0].mxu0
    %v1120 = vadd.f32 %v976, %v1119
    %v1121 = vpop.f32.mrb[0].mxu0
    %1122 = vmatprep.mubr.bf16.mxu0 0
    %1123 = vmatmul.mubr.bf16.gmra.mrb[0].mxu0 %v931
    %v1124 = vpop.f32.mrb[0].mxu0
    %v1125 = vadd.f32 %v976, %v1124
    %v1126 = vpop.f32.mrb[0].mxu0
    %v1127 = vpop.f32.mrb[0].mxu0
    %v1128 = vadd.f32 %v976, %v1127
    %v1129 = vpop.f32.mrb[0].mxu0
    %1130 = vmatprep.mubr.bf16.mxu0 0
    %1131 = vmatmul.mubr.bf16.gmra.mrb[0].mxu0 %v932
    %v1132 = vpop.f32.mrb[0].mxu0
    %v1133 = vadd.f32 %v976, %v1132
    %v1134 = vpop.f32.mrb[0].mxu0
    %v1135 = vpop.f32.mrb[0].mxu0
    %v1136 = vadd.f32 %v976, %v1135
    %v1137 = vpop.f32.mrb[0].mxu0
    %1138 = vmatprep.mubr.bf16.mxu0 0
    %1139 = vmatmul.mubr.bf16.gmra.mrb[0].mxu0 %v933
    %v1140 = vpop.f32.mrb[0].mxu0
    %v1141 = vadd.f32 %v976, %v1140
    %v1142 = vpop.f32.mrb[0].mxu0
    %v1143 = vpop.f32.mrb[0].mxu0
    %v1144 = vadd.f32 %v976, %v1143
    %v1145 = vpop.f32.mrb[0].mxu0
    %1146 = vmatprep.mubr.bf16.mxu0 0
    %1147 = vmatmul.mubr.bf16.gmra.mrb[0].mxu0 %v934
    %v1148 = vpop.f32.mrb[0].mxu0
    %v1149 = vadd.f32 %v976, %v1148
    %v1150 = vpop.f32.mrb[0].mxu0
    %v1151 = vpop.f32.mrb[0].mxu0
    %v1152 = vadd.f32 %v976, %v1151
    %v1153 = vpop.f32.mrb[0].mxu0
    %1154 = vmatprep.mubr.bf16.mxu0 0
    %1155 = vmatmul.mubr.bf16.gmra.mrb[0].mxu0 %v935
    %v1156 = vpop.f32.mrb[0].mxu0
    %v1157 = vadd.f32 %v976, %v1156
    %v1158 = vpop.f32.mrb[0].mxu0
    %v1159 = vpop.f32.mrb[0].mxu0
    %v1160 = vadd.f32 %v976, %v1159
    %v1161 = vpop.f32.mrb[0].mxu0
    %1162 = vmatprep.mubr.bf16.mxu0 0
    %1163 = vmatmul.mubr.bf16.gmra.mrb[0].mxu0 %v936
    %v1164 = vpop.f32.mrb[0].mxu0
    %v1165 = vadd.f32 %v976, %v1164
    %v1166 = vpop.f32.mrb[0].mxu0
    %v1167 = vpop.f32.mrb[0].mxu0
    %v1168 = vadd.f32 %v976, %v1167
    %v1169 = vpop.f32.mrb[0].mxu0
    %1170 = vmatprep.mubr.bf16.mxu0 0
    %1171 = vmatmul.mubr.bf16.gmra.mrb[0].mxu0 %v937
    %v1172 = vpop.f32.mrb[0].mxu0
    %v1173 = vadd.f32 %v976, %v1172
    %v1174 = vpop.f32.mrb[0].mxu0
    %v1175 = vpop.f32.mrb[0].mxu0
    %v1176 = vadd.f32 %v976, %v1175
    %v1177 = vpop.f32.mrb[0].mxu0
    %1178 = vmatprep.mubr.bf16.mxu0 0
    %1179 = vmatmul.mubr.bf16.gmra.mrb[0].mxu0 %v938
    %v1180 = vpop.f32.mrb[0].mxu0
    %v1181 = vadd.f32 %v976, %v1180
    %v1182 = vpop.f32.mrb[0].mxu0
    %v1183 = vpop.f32.mrb[0].mxu0
    %v1184 = vadd.f32 %v976, %v1183
    %v1185 = vpop.f32.mrb[0].mxu0
    %1186 = vmatprep.mubr.bf16.mxu0 0
    %1187 = vmatmul.mubr.bf16.gmra.mrb[0].mxu0 %v939
    %v1188 = vpop.f32.mrb[0].mxu0
    %v1189 = vadd.f32 %v976, %v1188
    %v1190 = vpop.f32.mrb[0].mxu0
    %v1191 = vpop.f32.mrb[0].mxu0
    %v1192 = vadd.f32 %v976, %v1191
    %v1193 = vpop.f32.mrb[0].mxu0
    %1194 = vmatprep.mubr.bf16.mxu0 0
    %1195 = vmatmul.mubr.bf16.gmra.mrb[0].mxu0 %v940
    %v1196 = vpop.f32.mrb[0].mxu0
    %v1197 = vadd.f32 %v976, %v1196
    %v1198 = vpop.f32.mrb[0].mxu0
    %v1199 = vpop.f32.mrb[0].mxu0
    %v1200 = vadd.f32 %v976, %v1199
    %v1201 = vpop.f32.mrb[0].mxu0
    %1202 = vmatprep.mubr.bf16.mxu0 0
    %1203 = vmatmul.mubr.bf16.gmra.mrb[0].mxu0 %v941
    %v1204 = vpop.f32.mrb[0].mxu0
    %v1205 = vadd.f32 %v976, %v1204
    %v1206 = vpop.f32.mrb[0].mxu0
    %v1207 = vpop.f32.mrb[0].mxu0
    %v1208 = vadd.f32 %v976, %v1207
    %v1209 = vpop.f32.mrb[0].mxu0
    %1210 = vmatprep.mubr.bf16.mxu0 0
    %1211 = vmatmul.mubr.bf16.gmra.mrb[0].mxu0 %v942
    %v1212 = vpop.f32.mrb[0].mxu0
    %v1213 = vadd.f32 %v976, %v1212
    %v1214 = vpop.f32.mrb[0].mxu0
    %v1215 = vpop.f32.mrb[0].mxu0
    %v1216 = vadd.f32 %v976, %v1215
    %v1217 = vpop.f32.mrb[0].mxu0
    %1218 = vmatprep.mubr.bf16.mxu0 0
    %1219 = vmatmul.mubr.bf16.gmra.mrb[0].mxu0 %v943
    %v1220 = vpop.f32.mrb[0].mxu0
    %v1221 = vadd.f32 %v976, %v1220
    %v1222 = vpop.f32.mrb[0].mxu0
    %v1223 = vpop.f32.mrb[0].mxu0
    %v1224 = vadd.f32 %v976, %v1223
    %v1225 = vpop.f32.mrb[0].mxu0
    %1226 = vmatprep.mubr.bf16.mxu0 0
    %1227 = vmatmul.mubr.bf16.gmra.mrb[0].mxu0 %v944
    %v1228 = vpop.f32.mrb[0].mxu0
    %v1229 = vadd.f32 %v976, %v1228
    %v1230 = vpop.f32.mrb[0].mxu0
    %v1231 = vpop.f32.mrb[0].mxu0
    %v1232 = vadd.f32 %v976, %v1231
    %v1233 = vpop.f32.mrb[0].mxu0
    %1234 = vmatprep.mubr.bf16.mxu0 0
    %1235 = vmatmul.mubr.bf16.gmra.mrb[0].mxu0 %v945
    %v1236 = vpop.f32.mrb[0].mxu0
    %v1237 = vadd.f32 %v976, %v1236
    %v1238 = vpop.f32.mrb[0].mxu0
    %v1239 = vpop.f32.mrb[0].mxu0
    %v1240 = vadd.f32 %v976, %v1239
    %v1241 = vpop.f32.mrb[0].mxu0
    %1242 = vmatprep.mubr.bf16.mxu0 0
    %1243 = vmatmul.mubr.bf16.gmra.mrb[0].mxu0 %v946
    %v1244 = vpop.f32.mrb[0].mxu0
    %v1245 = vadd.f32 %v976, %v1244
    %v1246 = vpop.f32.mrb[0].mxu0
    %v1247 = vpop.f32.mrb[0].mxu0
    %v1248 = vadd.f32 %v976, %v1247
    %v1249 = vpop.f32.mrb[0].mxu0
    %1250 = vmatprep.mubr.bf16.mxu0 0
    %1251 = vmatmul.mubr.bf16.gmra.mrb[0].mxu0 %v947
    %v1252 = vpop.f32.mrb[0].mxu0
    %v1253 = vadd.f32 %v976, %v1252
    %v1254 = vpop.f32.mrb[0].mxu0
    %v1255 = vpop.f32.mrb[0].mxu0
    %v1256 = vadd.f32 %v976, %v1255
    %v1257 = vpop.f32.mrb[0].mxu0
    %1258 = vmatprep.mubr.bf16.mxu0 0
    %1259 = vmatmul.mubr.bf16.gmra.mrb[0].mxu0 %v948
    %v1260 = vpop.f32.mrb[0].mxu0
    %v1261 = vadd.f32 %v976, %v1260
    %v1262 = vpop.f32.mrb[0].mxu0
    %v1263 = vpop.f32.mrb[0].mxu0
    %v1264 = vadd.f32 %v976, %v1263
    %v1265 = vpop.f32.mrb[0].mxu0
    %1266 = vmatprep.mubr.bf16.mxu0 0
    %1267 = vmatmul.mubr.bf16.gmra.mrb[0].mxu0 %v949
    %v1268 = vpop.f32.mrb[0].mxu0
    %v1269 = vadd.f32 %v976, %v1268
    %v1270 = vpop.f32.mrb[0].mxu0
    %v1271 = vpop.f32.mrb[0].mxu0
    %v1272 = vadd.f32 %v976, %v1271
    %v1273 = vpop.f32.mrb[0].mxu0
    %1274 = vmatprep.mubr.bf16.mxu0 0
    %1275 = vmatmul.mubr.bf16.gmra.mrb[0].mxu0 %v950
    %v1276 = vpop.f32.mrb[0].mxu0
    %v1277 = vadd.f32 %v976, %v1276
    %v1278 = vpop.f32.mrb[0].mxu0
    %v1279 = vpop.f32.mrb[0].mxu0
    %v1280 = vadd.f32 %v976, %v1279
    %v1281 = vpop.f32.mrb[0].mxu0
    %1282 = vmatprep.mubr.bf16.mxu0 0
    %1283 = vmatmul.mubr.bf16.gmra.mrb[0].mxu0 %v951
    %v1284 = vpop.f32.mrb[0].mxu0
    %v1285 = vadd.f32 %v976, %v1284
    %v1286 = vpop.f32.mrb[0].mxu0
    %v1287 = vpop.f32.mrb[0].mxu0
    %v1288 = vadd.f32 %v976, %v1287
    %v1289 = vpop.f32.mrb[0].mxu0
    %1290 = vmatprep.mubr.bf16.mxu0 0
    %1291 = vmatmul.mubr.bf16.gmra.mrb[0].mxu0 %v952
    %v1292 = vpop.f32.mrb[0].mxu0
    %v1293 = vadd.f32 %v976, %v1292
    %v1294 = vpop.f32.mrb[0].mxu0
    %v1295 = vpop.f32.mrb[0].mxu0
    %v1296 = vadd.f32 %v976, %v1295
    %v1297 = vpop.f32.mrb[0].mxu0
    %1298 = vmatprep.mubr.bf16.mxu0 0
    %1299 = vmatmul.mubr.bf16.gmra.mrb[0].mxu0 %v953
    %v1300 = vpop.f32.mrb[0].mxu0
    %v1301 = vadd.f32 %v976, %v1300
    %v1302 = vpop.f32.mrb[0].mxu0
    %v1303 = vpop.f32.mrb[0].mxu0
    %v1304 = vadd.f32 %v976, %v1303
    %v1305 = vpop.f32.mrb[0].mxu0
    %1306 = vmatprep.mubr.bf16.mxu0 0
    %1307 = vmatmul.mubr.bf16.gmra.mrb[0].mxu0 %v954
    %v1308 = vpop.f32.mrb[0].mxu0
    %v1309 = vadd.f32 %v976, %v1308
    %v1310 = vpop.f32.mrb[0].mxu0
    %v1311 = vpop.f32.mrb[0].mxu0
    %v1312 = vadd.f32 %v976, %v1311
    %v1313 = vpop.f32.mrb[0].mxu0
    %1314 = vdwg.mxu0
    %v1315 = vpack.c.bf16 %v1064, %v1061
    %v1316 = vpack.c.bf16 %v1072, %v1069
    %v1317 = vpack.c.bf16 %v1080, %v1077
    %v1318 = vpack.c.bf16 %v1088, %v1085
    %v1319 = vpack.c.bf16 %v1096, %v1093
    %v1320 = vpack.c.bf16 %v1104, %v1101
    %v1321 = vpack.c.bf16 %v1112, %v1109
    %v1322 = vpack.c.bf16 %v1120, %v1117
    %v1323 = vpack.c.bf16 %v1128, %v1125
    %v1324 = vpack.c.bf16 %v1136, %v1133
    %v1325 = vpack.c.bf16 %v1144, %v1141
    %v1326 = vpack.c.bf16 %v1152, %v1149
    %v1327 = vpack.c.bf16 %v1160, %v1157
    %v1328 = vpack.c.bf16 %v1168, %v1165
    %v1329 = vpack.c.bf16 %v1176, %v1173
    %v1330 = vpack.c.bf16 %v1184, %v1181
    %v1331 = vpack.c.bf16 %v1192, %v1189
    %v1332 = vpack.c.bf16 %v1200, %v1197
    %v1333 = vpack.c.bf16 %v1208, %v1205
    %v1334 = vpack.c.bf16 %v1216, %v1213
    %v1335 = vpack.c.bf16 %v1224, %v1221
    %v1336 = vpack.c.bf16 %v1232, %v1229
    %v1337 = vpack.c.bf16 %v1240, %v1237
    %v1338 = vpack.c.bf16 %v1248, %v1245
    %v1339 = vpack.c.bf16 %v1256, %v1253
    %v1340 = vpack.c.bf16 %v1264, %v1261
    %v1341 = vpack.c.bf16 %v1272, %v1269
    %v1342 = vpack.c.bf16 %v1280, %v1277
    %v1343 = vpack.c.bf16 %v1288, %v1285
    %v1344 = vpack.c.bf16 %v1296, %v1293
    %v1345 = vpack.c.bf16 %v1304, %v1301
    %v1346 = vpack.c.bf16 %v1312, %v1309
    %v1347 = vxor.u32 %v1315, 2147516416
    %v1348 = vxor.u32 %v1316, 2147516416
    %v1349 = vxor.u32 %v1317, 2147516416
    %v1350 = vxor.u32 %v1318, 2147516416
    %v1351 = vxor.u32 %v1319, 2147516416
    %v1352 = vxor.u32 %v1320, 2147516416
    %v1353 = vxor.u32 %v1321, 2147516416
    %v1354 = vxor.u32 %v1322, 2147516416
    %v1355 = vxor.u32 %v1323, 2147516416
    %v1356 = vxor.u32 %v1324, 2147516416
    %v1357 = vxor.u32 %v1325, 2147516416
    %v1358 = vxor.u32 %v1326, 2147516416
    %v1359 = vxor.u32 %v1327, 2147516416
    %v1360 = vxor.u32 %v1328, 2147516416
    %v1361 = vxor.u32 %v1329, 2147516416
    %v1362 = vxor.u32 %v1330, 2147516416
    %v1363 = vxor.u32 %v1331, 2147516416
    %v1364 = vxor.u32 %v1332, 2147516416
    %v1365 = vxor.u32 %v1333, 2147516416
    %v1366 = vxor.u32 %v1334, 2147516416
    %v1367 = vxor.u32 %v1335, 2147516416
    %v1368 = vxor.u32 %v1336, 2147516416
    %v1369 = vxor.u32 %v1337, 2147516416
    %v1370 = vxor.u32 %v1338, 2147516416
    %v1371 = vxor.u32 %v1339, 2147516416
    %v1372 = vxor.u32 %v1340, 2147516416
    %v1373 = vxor.u32 %v1341, 2147516416
    %v1374 = vxor.u32 %v1342, 2147516416
    %v1375 = vxor.u32 %v1343, 2147516416
    %v1376 = vxor.u32 %v1344, 2147516416
    %v1377 = vxor.u32 %v1345, 2147516416
    %v1378 = vxor.u32 %v1346, 2147516416
    %v1380 = vmul.bf16 %v1347, 1069105081
    %v1381 = vpow.bf16.pop %v1380
    %v1383 = vmul.bf16 %v1348, 1069105081
    %v1384 = vpow.bf16.pop %v1383
    %v1386 = vmul.bf16 %v1349, 1069105081
    %v1387 = vpow.bf16.pop %v1386
    %v1389 = vmul.bf16 %v1350, 1069105081
    %v1390 = vpow.bf16.pop %v1389
    %v1392 = vmul.bf16 %v1351, 1069105081
    %v1393 = vpow.bf16.pop %v1392
    %v1395 = vmul.bf16 %v1352, 1069105081
    %v1396 = vpow.bf16.pop %v1395
    %v1398 = vmul.bf16 %v1353, 1069105081
    %v1399 = vpow.bf16.pop %v1398
    %v1401 = vmul.bf16 %v1354, 1069105081
    %v1402 = vpow.bf16.pop %v1401
    %v1404 = vmul.bf16 %v1355, 1069105081
    %v1405 = vpow.bf16.pop %v1404
    %v1407 = vmul.bf16 %v1356, 1069105081
    %v1408 = vpow.bf16.pop %v1407
    %v1410 = vmul.bf16 %v1357, 1069105081
    %v1411 = vpow.bf16.pop %v1410
    %v1413 = vmul.bf16 %v1358, 1069105081
    %v1414 = vpow.bf16.pop %v1413
    %v1416 = vmul.bf16 %v1359, 1069105081
    %v1417 = vpow.bf16.pop %v1416
    %v1419 = vmul.bf16 %v1360, 1069105081
    %v1420 = vpow.bf16.pop %v1419
    %v1422 = vmul.bf16 %v1361, 1069105081
    %v1423 = vpow.bf16.pop %v1422
    %v1425 = vmul.bf16 %v1362, 1069105081
    %v1426 = vpow.bf16.pop %v1425
    %v1428 = vmul.bf16 %v1363, 1069105081
    %v1429 = vpow.bf16.pop %v1428
    %v1431 = vmul.bf16 %v1364, 1069105081
    %v1432 = vpow.bf16.pop %v1431
    %v1434 = vmul.bf16 %v1365, 1069105081
    %v1435 = vpow.bf16.pop %v1434
    %v1437 = vmul.bf16 %v1366, 1069105081
    %v1438 = vpow.bf16.pop %v1437
    %v1440 = vmul.bf16 %v1367, 1069105081
    %v1441 = vpow.bf16.pop %v1440
    %v1443 = vmul.bf16 %v1368, 1069105081
    %v1444 = vpow.bf16.pop %v1443
    %v1446 = vmul.bf16 %v1369, 1069105081
    %v1447 = vpow.bf16.pop %v1446
    %v1449 = vmul.bf16 %v1370, 1069105081
    %v1450 = vpow.bf16.pop %v1449
    %v1452 = vmul.bf16 %v1371, 1069105081
    %v1453 = vpow.bf16.pop %v1452
    %v1455 = vmul.bf16 %v1372, 1069105081
    %v1456 = vpow.bf16.pop %v1455
    %v1458 = vmul.bf16 %v1373, 1069105081
    %v1459 = vpow.bf16.pop %v1458
    %v1461 = vmul.bf16 %v1374, 1069105081
    %v1462 = vpow.bf16.pop %v1461
    %v1464 = vmul.bf16 %v1375, 1069105081
    %v1465 = vpow.bf16.pop %v1464
    %v1467 = vmul.bf16 %v1376, 1069105081
    %v1468 = vpow.bf16.pop %v1467
    %v1470 = vmul.bf16 %v1377, 1069105081
    %v1471 = vpow.bf16.pop %v1470
    %v1473 = vmul.bf16 %v1378, 1069105081
    %v1474 = vpow.bf16.pop %v1473
    %v1475 = vadd.bf16 %v1381, 1065369472
    %v1476 = vadd.bf16 %v1384, 1065369472
    %v1477 = vadd.bf16 %v1387, 1065369472
    %v1478 = vadd.bf16 %v1390, 1065369472
    %v1479 = vadd.bf16 %v1393, 1065369472
    %v1480 = vadd.bf16 %v1396, 1065369472
    %v1481 = vadd.bf16 %v1399, 1065369472
    %v1482 = vadd.bf16 %v1402, 1065369472
    %v1483 = vadd.bf16 %v1405, 1065369472
    %v1484 = vadd.bf16 %v1408, 1065369472
    %v1485 = vadd.bf16 %v1411, 1065369472
    %v1486 = vadd.bf16 %v1414, 1065369472
    %v1487 = vadd.bf16 %v1417, 1065369472
    %v1488 = vadd.bf16 %v1420, 1065369472
    %v1489 = vadd.bf16 %v1423, 1065369472
    %v1490 = vadd.bf16 %v1426, 1065369472
    %v1491 = vadd.bf16 %v1429, 1065369472
    %v1492 = vadd.bf16 %v1432, 1065369472
    %v1493 = vadd.bf16 %v1435, 1065369472
    %v1494 = vadd.bf16 %v1438, 1065369472
    %v1495 = vadd.bf16 %v1441, 1065369472
    %v1496 = vadd.bf16 %v1444, 1065369472
    %v1497 = vadd.bf16 %v1447, 1065369472
    %v1498 = vadd.bf16 %v1450, 1065369472
    %v1499 = vadd.bf16 %v1453, 1065369472
    %v1500 = vadd.bf16 %v1456, 1065369472
    %v1501 = vadd.bf16 %v1459, 1065369472
    %v1502 = vadd.bf16 %v1462, 1065369472
    %v1503 = vadd.bf16 %v1465, 1065369472
    %v1504 = vadd.bf16 %v1468, 1065369472
    %v1505 = vadd.bf16 %v1471, 1065369472
    %v1506 = vadd.bf16 %v1474, 1065369472
    %v1507 = vrcp.bf16.pop %v1475
    %v1508 = vmul.bf16 1065369472, %v1507
    %v1509 = vrcp.bf16.pop %v1476
    %v1510 = vmul.bf16 1065369472, %v1509
    %v1511 = vrcp.bf16.pop %v1477
    %v1512 = vmul.bf16 1065369472, %v1511
    %v1513 = vrcp.bf16.pop %v1478
    %v1514 = vmul.bf16 1065369472, %v1513
    %v1515 = vrcp.bf16.pop %v1479
    %v1516 = vmul.bf16 1065369472, %v1515
    %v1517 = vrcp.bf16.pop %v1480
    %v1518 = vmul.bf16 1065369472, %v1517
    %v1519 = vrcp.bf16.pop %v1481
    %v1520 = vmul.bf16 1065369472, %v1519
    %v1521 = vrcp.bf16.pop %v1482
    %v1522 = vmul.bf16 1065369472, %v1521
    %v1523 = vrcp.bf16.pop %v1483
    %v1524 = vmul.bf16 1065369472, %v1523
    %v1525 = vrcp.bf16.pop %v1484
    %v1526 = vmul.bf16 1065369472, %v1525
    %v1527 = vrcp.bf16.pop %v1485
    %v1528 = vmul.bf16 1065369472, %v1527
    %v1529 = vrcp.bf16.pop %v1486
    %v1530 = vmul.bf16 1065369472, %v1529
    %v1531 = vrcp.bf16.pop %v1487
    %v1532 = vmul.bf16 1065369472, %v1531
    %v1533 = vrcp.bf16.pop %v1488
    %v1534 = vmul.bf16 1065369472, %v1533
    %v1535 = vrcp.bf16.pop %v1489
    %v1536 = vmul.bf16 1065369472, %v1535
    %v1537 = vrcp.bf16.pop %v1490
    %v1538 = vmul.bf16 1065369472, %v1537
    %v1539 = vrcp.bf16.pop %v1491
    %v1540 = vmul.bf16 1065369472, %v1539
    %v1541 = vrcp.bf16.pop %v1492
    %v1542 = vmul.bf16 1065369472, %v1541
    %v1543 = vrcp.bf16.pop %v1493
    %v1544 = vmul.bf16 1065369472, %v1543
    %v1545 = vrcp.bf16.pop %v1494
    %v1546 = vmul.bf16 1065369472, %v1545
    %v1547 = vrcp.bf16.pop %v1495
    %v1548 = vmul.bf16 1065369472, %v1547
    %v1549 = vrcp.bf16.pop %v1496
    %v1550 = vmul.bf16 1065369472, %v1549
    %v1551 = vrcp.bf16.pop %v1497
    %v1552 = vmul.bf16 1065369472, %v1551
    %v1553 = vrcp.bf16.pop %v1498
    %v1554 = vmul.bf16 1065369472, %v1553
    %v1555 = vrcp.bf16.pop %v1499
    %v1556 = vmul.bf16 1065369472, %v1555
    %v1557 = vrcp.bf16.pop %v1500
    %v1558 = vmul.bf16 1065369472, %v1557
    %v1559 = vrcp.bf16.pop %v1501
    %v1560 = vmul.bf16 1065369472, %v1559
    %v1561 = vrcp.bf16.pop %v1502
    %v1562 = vmul.bf16 1065369472, %v1561
    %v1563 = vrcp.bf16.pop %v1503
    %v1564 = vmul.bf16 1065369472, %v1563
    %v1565 = vrcp.bf16.pop %v1504
    %v1566 = vmul.bf16 1065369472, %v1565
    %v1567 = vrcp.bf16.pop %v1505
    %v1568 = vmul.bf16 1065369472, %v1567
    %v1569 = vrcp.bf16.pop %v1506
    %v1570 = vmul.bf16 1065369472, %v1569
    %v1571 = vmul.bf16 %v1315, %v1508
    %v1572 = vmul.bf16 %v1316, %v1510
    %v1573 = vmul.bf16 %v1317, %v1512
    %v1574 = vmul.bf16 %v1318, %v1514
    %v1575 = vmul.bf16 %v1319, %v1516
    %v1576 = vmul.bf16 %v1320, %v1518
    %v1577 = vmul.bf16 %v1321, %v1520
    %v1578 = vmul.bf16 %v1322, %v1522
    %v1579 = vmul.bf16 %v1323, %v1524
    %v1580 = vmul.bf16 %v1324, %v1526
    %v1581 = vmul.bf16 %v1325, %v1528
    %v1582 = vmul.bf16 %v1326, %v1530
    %v1583 = vmul.bf16 %v1327, %v1532
    %v1584 = vmul.bf16 %v1328, %v1534
    %v1585 = vmul.bf16 %v1329, %v1536
    %v1586 = vmul.bf16 %v1330, %v1538
    %v1587 = vmul.bf16 %v1331, %v1540
    %v1588 = vmul.bf16 %v1332, %v1542
    %v1589 = vmul.bf16 %v1333, %v1544
    %v1590 = vmul.bf16 %v1334, %v1546
    %v1591 = vmul.bf16 %v1335, %v1548
    %v1592 = vmul.bf16 %v1336, %v1550
    %v1593 = vmul.bf16 %v1337, %v1552
    %v1594 = vmul.bf16 %v1338, %v1554
    %v1595 = vmul.bf16 %v1339, %v1556
    %v1596 = vmul.bf16 %v1340, %v1558
    %v1597 = vmul.bf16 %v1341, %v1560
    %v1598 = vmul.bf16 %v1342, %v1562
    %v1599 = vmul.bf16 %v1343, %v1564
    %v1600 = vmul.bf16 %v1344, %v1566
    %v1601 = vmul.bf16 %v1345, %v1568
    %v1602 = vmul.bf16 %v1346, %v1570
    %v1603 = vld [vmem:[#allocation2] sm:$0xff]
    %v1604 = vunpack.c.l.bf16 %v1571
    %v1605 = vunpack.c.h.bf16 %v1571
    %v1606 = vunpack.c.l.bf16 %v1572
    %v1607 = vunpack.c.h.bf16 %v1572
    %v1608 = vunpack.c.l.bf16 %v1573
    %v1609 = vunpack.c.h.bf16 %v1573
    %v1610 = vunpack.c.l.bf16 %v1574
    %v1611 = vunpack.c.h.bf16 %v1574
    %v1612 = vunpack.c.l.bf16 %v1575
    %v1613 = vunpack.c.h.bf16 %v1575
    %v1614 = vunpack.c.l.bf16 %v1576
    %v1615 = vunpack.c.h.bf16 %v1576
    %v1616 = vunpack.c.l.bf16 %v1577
    %v1617 = vunpack.c.h.bf16 %v1577
    %v1618 = vunpack.c.l.bf16 %v1578
    %v1619 = vunpack.c.h.bf16 %v1578
    %v1620 = vunpack.c.l.bf16 %v1579
    %v1621 = vunpack.c.h.bf16 %v1579
    %v1622 = vunpack.c.l.bf16 %v1580
    %v1623 = vunpack.c.h.bf16 %v1580
    %v1624 = vunpack.c.l.bf16 %v1581
    %v1625 = vunpack.c.h.bf16 %v1581
    %v1626 = vunpack.c.l.bf16 %v1582
    %v1627 = vunpack.c.h.bf16 %v1582
    %v1628 = vunpack.c.l.bf16 %v1583
    %v1629 = vunpack.c.h.bf16 %v1583
    %v1630 = vunpack.c.l.bf16 %v1584
    %v1631 = vunpack.c.h.bf16 %v1584
    %v1632 = vunpack.c.l.bf16 %v1585
    %v1633 = vunpack.c.h.bf16 %v1585
    %v1634 = vunpack.c.l.bf16 %v1586
    %v1635 = vunpack.c.h.bf16 %v1586
    %v1636 = vunpack.c.l.bf16 %v1587
    %v1637 = vunpack.c.h.bf16 %v1587
    %v1638 = vunpack.c.l.bf16 %v1588
    %v1639 = vunpack.c.h.bf16 %v1588
    %v1640 = vunpack.c.l.bf16 %v1589
    %v1641 = vunpack.c.h.bf16 %v1589
    %v1642 = vunpack.c.l.bf16 %v1590
    %v1643 = vunpack.c.h.bf16 %v1590
    %v1644 = vunpack.c.l.bf16 %v1591
    %v1645 = vunpack.c.h.bf16 %v1591
    %v1646 = vunpack.c.l.bf16 %v1592
    %v1647 = vunpack.c.h.bf16 %v1592
    %v1648 = vunpack.c.l.bf16 %v1593
    %v1649 = vunpack.c.h.bf16 %v1593
    %v1650 = vunpack.c.l.bf16 %v1594
    %v1651 = vunpack.c.h.bf16 %v1594
    %v1652 = vunpack.c.l.bf16 %v1595
    %v1653 = vunpack.c.h.bf16 %v1595
    %v1654 = vunpack.c.l.bf16 %v1596
    %v1655 = vunpack.c.h.bf16 %v1596
    %v1656 = vunpack.c.l.bf16 %v1597
    %v1657 = vunpack.c.h.bf16 %v1597
    %v1658 = vunpack.c.l.bf16 %v1598
    %v1659 = vunpack.c.h.bf16 %v1598
    %v1660 = vunpack.c.l.bf16 %v1599
    %v1661 = vunpack.c.h.bf16 %v1599
    %v1662 = vunpack.c.l.bf16 %v1600
    %v1663 = vunpack.c.h.bf16 %v1600
    %v1664 = vunpack.c.l.bf16 %v1601
    %v1665 = vunpack.c.h.bf16 %v1601
    %v1666 = vunpack.c.l.bf16 %v1602
    %v1667 = vunpack.c.h.bf16 %v1602
    %v1668 = vadd.f32 %v1604, %v1605
    %v1669 = vadd.f32 %v1668, %v1606
    %v1670 = vadd.f32 %v1669, %v1607
    %v1671 = vadd.f32 %v1670, %v1608
    %v1672 = vadd.f32 %v1671, %v1609
    %v1673 = vadd.f32 %v1672, %v1610
    %v1674 = vadd.f32 %v1673, %v1611
    %v1675 = vrot.slane %v1674, 4
    %v1676 = vadd.f32 %v1674, %v1675
    %v1677 = vrot.slane %v1676, 2
    %v1678 = vadd.f32 %v1676, %v1677
    %v1679 = vrot.slane %v1678, 1
    %v1680 = vadd.f32 %v1678, %v1679
    %v1681 = vadd.f32 %v1612, %v1613
    %v1682 = vadd.f32 %v1681, %v1614
    %v1683 = vadd.f32 %v1682, %v1615
    %v1684 = vadd.f32 %v1683, %v1616
    %v1685 = vadd.f32 %v1684, %v1617
    %v1686 = vadd.f32 %v1685, %v1618
    %v1687 = vadd.f32 %v1686, %v1619
    %v1688 = vrot.slane %v1687, 4
    %v1689 = vadd.f32 %v1687, %v1688
    %v1690 = vrot.slane %v1689, 2
    %v1691 = vadd.f32 %v1689, %v1690
    %v1692 = vrot.slane %v1691, 1
    %v1693 = vadd.f32 %v1691, %v1692
    %v1694 = vadd.f32 %v1620, %v1621
    %v1695 = vadd.f32 %v1694, %v1622
    %v1696 = vadd.f32 %v1695, %v1623
    %v1697 = vadd.f32 %v1696, %v1624
    %v1698 = vadd.f32 %v1697, %v1625
    %v1699 = vadd.f32 %v1698, %v1626
    %v1700 = vadd.f32 %v1699, %v1627
    %v1701 = vrot.slane %v1700, 4
    %v1702 = vadd.f32 %v1700, %v1701
    %v1703 = vrot.slane %v1702, 2
    %v1704 = vadd.f32 %v1702, %v1703
    %v1705 = vrot.slane %v1704, 1
    %v1706 = vadd.f32 %v1704, %v1705
    %v1707 = vadd.f32 %v1628, %v1629
    %v1708 = vadd.f32 %v1707, %v1630
    %v1709 = vadd.f32 %v1708, %v1631
    %v1710 = vadd.f32 %v1709, %v1632
    %v1711 = vadd.f32 %v1710, %v1633
    %v1712 = vadd.f32 %v1711, %v1634
    %v1713 = vadd.f32 %v1712, %v1635
    %v1714 = vrot.slane %v1713, 4
    %v1715 = vadd.f32 %v1713, %v1714
    %v1716 = vrot.slane %v1715, 2
    %v1717 = vadd.f32 %v1715, %v1716
    %v1718 = vrot.slane %v1717, 1
    %v1719 = vadd.f32 %v1717, %v1718
    %v1720 = vadd.f32 %v1636, %v1637
    %v1721 = vadd.f32 %v1720, %v1638
    %v1722 = vadd.f32 %v1721, %v1639
    %v1723 = vadd.f32 %v1722, %v1640
    %v1724 = vadd.f32 %v1723, %v1641
    %v1725 = vadd.f32 %v1724, %v1642
    %v1726 = vadd.f32 %v1725, %v1643
    %v1727 = vrot.slane %v1726, 4
    %v1728 = vadd.f32 %v1726, %v1727
    %v1729 = vrot.slane %v1728, 2
    %v1730 = vadd.f32 %v1728, %v1729
    %v1731 = vrot.slane %v1730, 1
    %v1732 = vadd.f32 %v1730, %v1731
    %v1733 = vadd.f32 %v1644, %v1645
    %v1734 = vadd.f32 %v1733, %v1646
    %v1735 = vadd.f32 %v1734, %v1647
    %v1736 = vadd.f32 %v1735, %v1648
    %v1737 = vadd.f32 %v1736, %v1649
    %v1738 = vadd.f32 %v1737, %v1650
    %v1739 = vadd.f32 %v1738, %v1651
    %v1740 = vrot.slane %v1739, 4
    %v1741 = vadd.f32 %v1739, %v1740
    %v1742 = vrot.slane %v1741, 2
    %v1743 = vadd.f32 %v1741, %v1742
    %v1744 = vrot.slane %v1743, 1
    %v1745 = vadd.f32 %v1743, %v1744
    %v1746 = vadd.f32 %v1652, %v1653
    %v1747 = vadd.f32 %v1746, %v1654
    %v1748 = vadd.f32 %v1747, %v1655
    %v1749 = vadd.f32 %v1748, %v1656
    %v1750 = vadd.f32 %v1749, %v1657
    %v1751 = vadd.f32 %v1750, %v1658
    %v1752 = vadd.f32 %v1751, %v1659
    %v1753 = vrot.slane %v1752, 4
    %v1754 = vadd.f32 %v1752, %v1753
    %v1755 = vrot.slane %v1754, 2
    %v1756 = vadd.f32 %v1754, %v1755
    %v1757 = vrot.slane %v1756, 1
    %v1758 = vadd.f32 %v1756, %v1757
    %v1759 = vadd.f32 %v1660, %v1661
    %v1760 = vadd.f32 %v1759, %v1662
    %v1761 = vadd.f32 %v1760, %v1663
    %v1762 = vadd.f32 %v1761, %v1664
    %v1763 = vadd.f32 %v1762, %v1665
    %v1764 = vadd.f32 %v1763, %v1666
    %v1765 = vadd.f32 %v1764, %v1667
    %v1766 = vrot.slane %v1765, 4
    %v1767 = vadd.f32 %v1765, %v1766
    %v1768 = vrot.slane %v1767, 2
    %v1769 = vadd.f32 %v1767, %v1768
    %v1770 = vrot.slane %v1769, 1
    %v1771 = vadd.f32 %v1769, %v1770
    %vm1780 = vcmask 1041409
    %v1781 = vsel %vm1780, %v1693, %v1680
    %vm1782 = vcmask 1042434
    %v1783 = vsel %vm1782, %v1706, %v1781
    %vm1784 = vcmask 1043459
    %v1785 = vsel %vm1784, %v1719, %v1783
    %vm1786 = vcmask 1044484
    %v1787 = vsel %vm1786, %v1732, %v1785
    %vm1788 = vcmask 1045509
    %v1789 = vsel %vm1788, %v1745, %v1787
    %vm1790 = vcmask 1046534
    %v1791 = vsel %vm1790, %v1758, %v1789
    %vm1792 = vcmask 1047559
    %v1793 = vsel %vm1792, %v1771, %v1791
    %v1795 = vadd.f32 %v1603, %v1793
    %1796 = vst [vmem:[#allocation2] sm:$0xff] %v1795
    // Predicated region
    $region34: #{tpu_custom_call.1} parent=1 // pred_check
      %p1797 = pneg %p29
    $region35: #{tpu_custom_call.1} parent=1 // pred_check_branch
      %1799 = sbr.rel (%p1797) target = $region37
    $region36: #{tpu_custom_call.1} parent=1 // pred_region
      %v1800 = vld [vmem:[#allocation2] sm:$0xff]
      %v1801 = vmul.f32 %v1800, 0.015625
      %v1802 = vpack.c.bf16 %v1801, %v1801
      %v1803 = vld [vmem:[%s5] sm:$0xf]
      %v1804 = vld [vmem:[%s5 + $0x4] sm:$0xf]
      %v1805 = vld [vmem:[%s5 + $0x8] sm:$0xf]
      %v1806 = vld [vmem:[%s5 + $0xc] sm:$0xf]
      %v1807 = vld [vmem:[%s5 + $0x10] sm:$0xf]
      %v1808 = vld [vmem:[%s5 + $0x14] sm:$0xf]
      %v1809 = vld [vmem:[%s5 + $0x18] sm:$0xf]
      %v1810 = vld [vmem:[%s5 + $0x1c] sm:$0xf]
      %v1811 = vld [vmem:[%s5 + $0x20] sm:$0xf]
      %v1812 = vld [vmem:[%s5 + $0x24] sm:$0xf]
      %v1813 = vld [vmem:[%s5 + $0x28] sm:$0xf]
      %v1814 = vld [vmem:[%s5 + $0x2c] sm:$0xf]
      %v1815 = vld [vmem:[%s5 + $0x30] sm:$0xf]
      %v1816 = vld [vmem:[%s5 + $0x34] sm:$0xf]
      %v1817 = vld [vmem:[%s5 + $0x38] sm:$0xf]
      %v1818 = vld [vmem:[%s5 + $0x3c] sm:$0xf]
      %v1819 = vld [vmem:[%s6] sm:$0x1]
      %v1821 = vlaneseq
      %v1822 = vshrl.u32 %v1821, 7
      %v1823 = vsub.s32 0, %v1822
      %v1824 = vrot.slane %v1819, %v1823
      %v1842 = vunpack.c.l.b16 %v1803
      %v1843 = vunpack.c.l.b16 %v1804
      %v1844 = vunpack.c.l.b16 %v1805
      %v1845 = vunpack.c.l.b16 %v1806
      %v1846 = vunpack.c.l.b16 %v1807
      %v1847 = vunpack.c.l.b16 %v1808
      %v1848 = vunpack.c.l.b16 %v1809
      %v1849 = vunpack.c.l.b16 %v1810
      %v1850 = vunpack.c.l.b16 %v1811
      %v1851 = vunpack.c.l.b16 %v1812
      %v1852 = vunpack.c.l.b16 %v1813
      %v1853 = vunpack.c.l.b16 %v1814
      %v1854 = vunpack.c.l.b16 %v1815
      %v1855 = vunpack.c.l.b16 %v1816
      %v1856 = vunpack.c.l.b16 %v1817
      %v1857 = vunpack.c.l.b16 %v1818
      %v1858 = vpack.c.b16 %v1843, %v1842
      %v1859 = vpack.c.b16 %v1845, %v1844
      %v1860 = vpack.c.b16 %v1847, %v1846
      %v1861 = vpack.c.b16 %v1849, %v1848
      %v1862 = vpack.c.b16 %v1851, %v1850
      %v1863 = vpack.c.b16 %v1853, %v1852
      %v1864 = vpack.c.b16 %v1855, %v1854
      %v1865 = vpack.c.b16 %v1857, %v1856
      %1874 = vmatprep.subr.bf16.mxu0 0
      %1875 = vmatpush1.bf16.msra.mxu0 %v1858
      %1876 = vmatprep.subr.bf16.mxu0 0
      %1877 = vmatpush1.bf16.msra.mxu0 %v1859
      %1878 = vmatprep.subr.bf16.mxu0 0
      %1879 = vmatpush1.bf16.msra.mxu0 %v1860
      %1880 = vmatprep.subr.bf16.mxu0 0
      %1881 = vmatpush1.bf16.msra.mxu0 %v1861
      %1882 = vmatprep.subr.bf16.mxu0 0
      %1883 = vmatpush1.bf16.msra.mxu0 %v1862
      %1884 = vmatprep.subr.bf16.mxu0 0
      %1885 = vmatpush1.bf16.msra.mxu0 %v1863
      %1886 = vmatprep.subr.bf16.mxu0 0
      %1887 = vmatpush1.bf16.msra.mxu0 %v1864
      %1888 = vmatprep.subr.bf16.mxu0 0
      %1889 = vmatpush1.bf16.msra.mxu0 %v1865
      %1890 = vmatprep.subr.bf16.mxu0 0
      %1891 = vmatpush1.bf16.msra.mxu0 0
      %1892 = vmatprep.subr.bf16.mxu0 0
      %1893 = vmatpush1.bf16.msra.mxu0 0
      %1894 = vmatprep.subr.bf16.mxu0 0
      %1895 = vmatpush1.bf16.msra.mxu0 0
      %1896 = vmatprep.subr.bf16.mxu0 0
      %1897 = vmatpush1.bf16.msra.mxu0 0
      %1898 = vmatprep.subr.bf16.mxu0 0
      %1899 = vmatpush1.bf16.msra.mxu0 0
      %1900 = vmatprep.subr.bf16.mxu0 0
      %1901 = vmatpush1.bf16.msra.mxu0 0
      %1902 = vmatprep.subr.bf16.mxu0 0
      %1903 = vmatpush1.bf16.msra.mxu0 0
      %1904 = vmatprep.subr.bf16.mxu0 0
      %1905 = vmatpush1.bf16.msra.mxu0 0
      %1906 = vmatprep.mubr.bf16.mxu0 0
      %1907 = vmatmul.mubr.bf16.gmra.mrb[0].mxu0 %v1802
      %v1908 = vpop.f32.mrb[0].mxu0
      %v1909 = vadd.f32 %v1824, %v1908
      %v1910 = vpop.f32.mrb[0].mxu0
      %v1911 = vpop.f32.mrb[0].mxu0
      %v1912 = vpop.f32.mrb[0].mxu0
      %1913 = vdwg.mxu0
      %1914 = vst [vmem:[#allocation3] sm:$0xff] %v1909
    $region37: #{tpu_custom_call.1} parent=1 // pred_fallthru
      _
    // Predicated region
    $region38: #{tpu_custom_call.1} parent=1 // pred_check
      _
    $region39: #{tpu_custom_call.1} parent=1 // pred_check_branch
      %1916 = sbr.rel (0) target = $region41
    $region40: #{tpu_custom_call.1} parent=1 // pred_region
      %s1918 = ssub.s32 128, 128
      %1919 = vsyncadd [#allocation4], %s1918
      %s1921 = sshll.u32 [#allocation3], 4
      %s1922 = int_to_ptr.vmem [resolvable:$true] %s1921
      %1924 = dma.vmem_to_hbm [thread:$0]  %s1922, 128, %s7, [#allocation4]
    $region41: #{tpu_custom_call.1} parent=1 // pred_fallthru
      _
    // Predicated region
    $region42: #{tpu_custom_call.1} parent=1 // pred_check
      _
    $region43: #{tpu_custom_call.1} parent=1 // pred_check_branch
      %1926 = sbr.rel (0) target = $region45
    $region44: #{tpu_custom_call.1} parent=1 // pred_region
      %1927 = dma.done [#allocation4], 128
    $region45: #{tpu_custom_call.1} parent=1 // pred_fallthru
      _
    %1928 = vsyncpa [#allocation4], 1

</llo_original>
